<compile_context>
chip_gen: v7x
topology: tpu7x:2x2x1
jax: 0.10.0
libtpu: 0.0.40
codegen_flags: <defaults>
</compile_context>

<pallas_src>
from math import sqrt

import jax
import jax.numpy as jnp
from jax.experimental import pallas as pl
from jax.experimental.pallas import tpu as pltpu

# ----------------------- small shapes consistent with the module -----------------------
BATCH     = 2
LENGTH_X  = 8      # n_x
LENGTH_Y  = 8      # n_y
DIM_IN_X  = 32
DIM_IN_Y  = 16
DIM_K     = 16
DIM_V     = 16
NUM_HEADS = 8
DK = DIM_K // NUM_HEADS          # 2
DV = DIM_V // NUM_HEADS          # 2
NORM_FACT = 1.0 / sqrt(DK)

FC_DIM1 = DIM_V * LENGTH_X       # 128
FC_DIM2 = 192
FC_DIM3 = 32
FC_DIM4 = 8
FC_DIM5 = 2
BN_EPS  = 1e-5

NROWS = BATCH * LENGTH_Y * LENGTH_X   # 128 rows, ordered (b, j, i)


# ------------------------------- Pallas kernel ------------------------------------------
def _softmax_over_keys(z):
    """Softmax over axis=1 (the key / n_y axis) of a (B, n_y, n_x, heads) tensor."""
    m = jnp.max(z, axis=1, keepdims=True)
    e = jnp.exp(z - m)
    return e * pl.reciprocal(jnp.sum(e, axis=1, keepdims=True), approx=True)


def fused_kernel(xrep_ref, yrep_ref, wq_ref, wk_ref, wv_ref, sel_qk_ref, sel_v_ref,
                 w1r_ref, b1_ref, w2_ref, b2_ref, w3_ref, b3_ref, w4_ref, b4_ref,
                 out_ref, att_scr):
    # --- q/k/v projections, batched over all (b, j, i) rows: one MXU pass each ---
    qrep = jnp.dot(xrep_ref[...], wq_ref[...], preferred_element_type=jnp.float32)  # (128, dim_k)
    krep = jnp.dot(yrep_ref[...], wk_ref[...], preferred_element_type=jnp.float32)  # (128, dim_k)
    vrep = jnp.dot(yrep_ref[...], wv_ref[...], preferred_element_type=jnp.float32)  # (128, dim_v)

    # --- per-head scores: lane-wise q*k product, head-sum via selector matmul (scale folded in)
    s = jnp.dot(qrep * krep, sel_qk_ref[...], preferred_element_type=jnp.float32)   # (128, nh)
    s4 = s.reshape(BATCH, LENGTH_Y, LENGTH_X, NUM_HEADS)

    d4 = _softmax_over_keys(s4)            # softmax over keys
    d4 = _softmax_over_keys(1.0 - d4)      # contrastive (double) softmax

    # --- spread head weights back onto that head's dv lanes, weight v, reduce over keys
    drep = jnp.dot(d4.reshape(NROWS, NUM_HEADS), sel_v_ref[...],
                   preferred_element_type=jnp.float32)                              # (128, dim_v)
    wv4 = (drep * vrep).reshape(BATCH, LENGTH_Y, LENGTH_X, DIM_V)
    ctx = jnp.sum(wv4, axis=1)                                                      # (B, n_x, dim_v)

    q3 = qrep.reshape(BATCH, LENGTH_Y, LENGTH_X, DIM_K)[:, 0]     # de-replicated q  (B, n_x, dim_k)
    att_scr[...] = q3 + ctx                # torch layout: att[b, i, h*dv + d]

    # --- MLP head: fc1->relu->bn1->fc2->relu->bn2->fc3->relu->bn3->fc4 (BN folded into next fc,
    #     dropout = identity).  The (n_x*dim_v) flatten is absorbed into per-position w1 blocks.
    h = b1_ref[...]                                               # (1, 192) -> broadcasts to (B, 192)
    for i in range(LENGTH_X):
        h = h + jnp.dot(att_scr[:, i, :], w1r_ref[i], preferred_element_type=jnp.float32)
    h = jnp.maximum(h, 0.0)
    h = jnp.maximum(jnp.dot(h, w2_ref[...], preferred_element_type=jnp.float32) + b2_ref[...], 0.0)
    h = jnp.maximum(jnp.dot(h, w3_ref[...], preferred_element_type=jnp.float32) + b3_ref[...], 0.0)
    out_ref[...] = (jnp.dot(h, w4_ref[...], preferred_element_type=jnp.float32)
                    + b4_ref[...]).astype(out_ref.dtype)


# --------------------------------- wrapper ----------------------------------------------
def contrastive_attention_network(x, y, p):
    # ---- trace-time glue (free, plain XLA feeding the single fused kernel) ----
    # Replicate x over the key axis and y over the query axis so every in-kernel op is a plain
    # 2D matmul / elementwise op / leading-axis reduction.  Row order: (b, j, i).
    xrep = jnp.broadcast_to(x[:, None, :, :], (BATCH, LENGTH_Y, LENGTH_X, DIM_IN_X)
                            ).reshape(NROWS, DIM_IN_X)
    yrep = jnp.broadcast_to(y[:, :, None, :], (BATCH, LENGTH_Y, LENGTH_X, DIM_IN_Y)
                            ).reshape(NROWS, DIM_IN_Y)

    # Head selector matrices (constants): sum the q*k lanes belonging to each head (scaled by
    # 1/sqrt(dk)), and spread each head's attention weight back over its dv lanes.
    heads = jnp.arange(NUM_HEADS, dtype=jnp.int32)
    sel_qk = (jnp.arange(DIM_K, dtype=jnp.int32)[:, None] // DK == heads[None, :]
              ).astype(jnp.float32) * NORM_FACT                        # (dim_k, nh)
    sel_v = (heads[:, None] == jnp.arange(DIM_V, dtype=jnp.int32)[None, :] // DV
             ).astype(jnp.float32)                                     # (nh, dim_v)

    # Fold eval-mode BatchNorm1d (applied after ReLU) into the following linear layer.
    def bn_fold_into_next(w, b, g, beta, m, v):
        s = g / jnp.sqrt(v + BN_EPS)
        t = beta - m * s
        return w * s[:, None], (t @ w + b).reshape(1, -1)

    w2f, b2f = bn_fold_into_next(p["w2"], p["b2"], p["bn1_g"], p["bn1_b"], p["bn1_m"], p["bn1_v"])
    w3f, b3f = bn_fold_into_next(p["w3"], p["b3"], p["bn2_g"], p["bn2_b"], p["bn2_m"], p["bn2_v"])
    w4f, b4f = bn_fold_into_next(p["w4"], p["b4"], p["bn3_g"], p["bn3_b"], p["bn3_m"], p["bn3_v"])

    w1r = p["w1"].reshape(LENGTH_X, DIM_V, FC_DIM2)   # fc1 rows grouped per query position
    b1 = p["b1"].reshape(1, FC_DIM2)

    inputs = (xrep, yrep, p["wq"], p["wk"], p["wv"], sel_qk, sel_v,
              w1r, b1, w2f, b2f, w3f, b3f, w4f, b4f)

    vmem = pltpu.MemorySpace.VMEM
    return pl.pallas_call(
        fused_kernel,
        out_shape=jax.ShapeDtypeStruct((BATCH, FC_DIM5), jnp.float32),
        in_specs=[pl.BlockSpec(memory_space=vmem)] * len(inputs),
        out_specs=pl.BlockSpec(memory_space=vmem),
        scratch_shapes=[pltpu.VMEM((BATCH, LENGTH_X, DIM_V), jnp.float32)],
    )(*inputs)


# ---------------------------- pure-JAX reference ----------------------------------------
def reference(x, y, p):
    """Mirrors the PyTorch forward (eval mode, dropout = identity)."""
    q = x @ p["wq"]
    k = y @ p["wk"]
    v = y @ p["wv"]

    def split(t, d):
        b, n, _ = t.shape
        return t.reshape(b, n, NUM_HEADS, d).transpose(0, 2, 1, 3)   # (B, nh, n, d)

    qh, kh, vh = split(q, DK), split(k, DK), split(v, DV)
    dist = jnp.einsum("bhqd,bhkd->bhqk", qh, kh) * NORM_FACT
    dist = jax.nn.softmax(dist, axis=-1)
    dist = jax.nn.softmax(1.0 - dist, axis=-1)
    att = qh + jnp.einsum("bhqk,bhkd->bhqd", dist, vh)
    att = att.transpose(0, 2, 1, 3).reshape(BATCH, LENGTH_X, DIM_V).reshape(BATCH, -1)

    def bn(h, g, b, m, vv):
        return (h - m) / jnp.sqrt(vv + BN_EPS) * g + b

    h = jnp.maximum(att @ p["w1"] + p["b1"], 0.0)
    h = bn(h, p["bn1_g"], p["bn1_b"], p["bn1_m"], p["bn1_v"])
    h = jnp.maximum(h @ p["w2"] + p["b2"], 0.0)
    h = bn(h, p["bn2_g"], p["bn2_b"], p["bn2_m"], p["bn2_v"])
    h = jnp.maximum(h @ p["w3"] + p["b3"], 0.0)
    h = bn(h, p["bn3_g"], p["bn3_b"], p["bn3_m"], p["bn3_v"])
    return h @ p["w4"] + p["b4"]


def init_params(key):
    ks = jax.random.split(key, 20)

    def lin(k, fan_in, shape):
        bound = 1.0 / sqrt(fan_in)
        return jax.random.uniform(k, shape, jnp.float32, -bound, bound)

    return dict(
        wq=lin(ks[0], DIM_IN_X, (DIM_IN_X, DIM_K)),
        wk=lin(ks[1], DIM_IN_Y, (DIM_IN_Y, DIM_K)),
        wv=lin(ks[2], DIM_IN_Y, (DIM_IN_Y, DIM_V)),
        w1=lin(ks[3], FC_DIM1, (FC_DIM1, FC_DIM2)), b1=lin(ks[4], FC_DIM1, (FC_DIM2,)),
        w2=lin(ks[5], FC_DIM2, (FC_DIM2, FC_DIM3)), b2=lin(ks[6], FC_DIM2, (FC_DIM3,)),
        w3=lin(ks[7], FC_DIM3, (FC_DIM3, FC_DIM4)), b3=lin(ks[8], FC_DIM3, (FC_DIM4,)),
        w4=lin(ks[9], FC_DIM4, (FC_DIM4, FC_DIM5)), b4=lin(ks[10], FC_DIM4, (FC_DIM5,)),
        bn1_g=1.0 + 0.1 * jax.random.normal(ks[11], (FC_DIM2,), jnp.float32),
        bn1_b=0.1 * jax.random.normal(ks[12], (FC_DIM2,), jnp.float32),
        bn1_m=0.1 * jax.random.normal(ks[13], (FC_DIM2,), jnp.float32),
        bn1_v=0.5 + jnp.abs(jax.random.normal(ks[14], (FC_DIM2,), jnp.float32)),
        bn2_g=1.0 + 0.1 * jax.random.normal(ks[15], (FC_DIM3,), jnp.float32),
        bn2_b=0.1 * jax.random.normal(ks[16], (FC_DIM3,), jnp.float32),
        bn2_m=0.1 * jax.random.normal(ks[17], (FC_DIM3,), jnp.float32),
        bn2_v=0.5 + jnp.abs(jax.random.normal(ks[18], (FC_DIM3,), jnp.float32)),
        bn3_g=jnp.ones((FC_DIM4,), jnp.float32),
        bn3_b=jnp.zeros((FC_DIM4,), jnp.float32),
        bn3_m=0.05 * jnp.ones((FC_DIM4,), jnp.float32),
        bn3_v=jnp.full((FC_DIM4,), 0.8, jnp.float32),
    )


if __name__ == "__main__":
    key = jax.random.PRNGKey(0)
    kx, ky, kp = jax.random.split(key, 3)
    x = jax.random.normal(kx, (BATCH, LENGTH_X, DIM_IN_X), jnp.float32)
    y = jax.random.normal(ky, (BATCH, LENGTH_Y, DIM_IN_Y), jnp.float32)
    params = init_params(kp)

    out = jax.block_until_ready(jax.jit(contrastive_attention_network)(x, y, params))

    with jax.default_matmul_precision("float32"):
        ref = jax.block_until_ready(reference(x, y, params))

    assert out.shape == (BATCH, FC_DIM5), out.shape
    if not bool(jnp.allclose(out, ref, rtol=2e-2, atol=2e-2)):
        raise AssertionError(f"mismatch: kernel={out}, ref={ref}")
    print("KERNEL_OK")
</pallas_src>

<mosaic_0001>
module attributes {stable_mosaic.version = 11 : i64} {
  func.func @fused_kernel(%arg0: memref<128x32xf32, #tpu.memory_space<vmem>>, %arg1: memref<128x16xf32, #tpu.memory_space<vmem>>, %arg2: memref<32x16xf32, #tpu.memory_space<vmem>>, %arg3: memref<16x16xf32, #tpu.memory_space<vmem>>, %arg4: memref<16x16xf32, #tpu.memory_space<vmem>>, %arg5: memref<16x8xf32, #tpu.memory_space<vmem>>, %arg6: memref<8x16xf32, #tpu.memory_space<vmem>>, %arg7: memref<8x16x192xf32, #tpu.memory_space<vmem>>, %arg8: memref<1x192xf32, #tpu.memory_space<vmem>>, %arg9: memref<192x32xf32, #tpu.memory_space<vmem>>, %arg10: memref<1x32xf32, #tpu.memory_space<vmem>>, %arg11: memref<32x8xf32, #tpu.memory_space<vmem>>, %arg12: memref<1x8xf32, #tpu.memory_space<vmem>>, %arg13: memref<8x2xf32, #tpu.memory_space<vmem>>, %arg14: memref<1x2xf32, #tpu.memory_space<vmem>>, %arg15: memref<2x2xf32, #tpu.memory_space<vmem>>, %arg16: memref<2x8x16xf32, #tpu.memory_space<vmem>>) attributes {dimension_semantics = [], scalar_prefetch = 0 : i64, scratch_operands = 1 : i64, tpu.core_type = #tpu.core_type<tc>} {
    %c0 = arith.constant 0 : index
    %c0_0 = arith.constant 0 : index
    %0 = vector.load %arg0[%c0, %c0_0] : memref<128x32xf32, #tpu.memory_space<vmem>>, vector<128x32xf32>
    %c0_1 = arith.constant 0 : index
    %c0_2 = arith.constant 0 : index
    %1 = vector.load %arg2[%c0_1, %c0_2] : memref<32x16xf32, #tpu.memory_space<vmem>>, vector<32x16xf32>
    %cst = arith.constant dense<0.000000e+00> : vector<128x16xf32>
    %2 = tpu.matmul %0, %1, %cst {dimension_numbers = #tpu.dot_dimension_numbers<[1], [0], [0], [1], [0, 0, 1, 1], [], []>} : vector<128x32xf32>, vector<32x16xf32>, vector<128x16xf32> -> vector<128x16xf32>
    %c0_3 = arith.constant 0 : index
    %c0_4 = arith.constant 0 : index
    %3 = vector.load %arg1[%c0_3, %c0_4] : memref<128x16xf32, #tpu.memory_space<vmem>>, vector<128x16xf32>
    %c0_5 = arith.constant 0 : index
    %c0_6 = arith.constant 0 : index
    %4 = vector.load %arg3[%c0_5, %c0_6] : memref<16x16xf32, #tpu.memory_space<vmem>>, vector<16x16xf32>
    %cst_7 = arith.constant dense<0.000000e+00> : vector<128x16xf32>
    %5 = tpu.matmul %3, %4, %cst_7 {dimension_numbers = #tpu.dot_dimension_numbers<[1], [0], [0], [1], [0, 0, 1, 1], [], []>} : vector<128x16xf32>, vector<16x16xf32>, vector<128x16xf32> -> vector<128x16xf32>
    %c0_8 = arith.constant 0 : index
    %c0_9 = arith.constant 0 : index
    %6 = vector.load %arg1[%c0_8, %c0_9] : memref<128x16xf32, #tpu.memory_space<vmem>>, vector<128x16xf32>
    %c0_10 = arith.constant 0 : index
    %c0_11 = arith.constant 0 : index
    %7 = vector.load %arg4[%c0_10, %c0_11] : memref<16x16xf32, #tpu.memory_space<vmem>>, vector<16x16xf32>
    %cst_12 = arith.constant dense<0.000000e+00> : vector<128x16xf32>
    %8 = tpu.matmul %6, %7, %cst_12 {dimension_numbers = #tpu.dot_dimension_numbers<[1], [0], [0], [1], [0, 0, 1, 1], [], []>} : vector<128x16xf32>, vector<16x16xf32>, vector<128x16xf32> -> vector<128x16xf32>
    %9 = arith.mulf %2, %5 : vector<128x16xf32>
    %c0_13 = arith.constant 0 : index
    %c0_14 = arith.constant 0 : index
    %10 = vector.load %arg5[%c0_13, %c0_14] : memref<16x8xf32, #tpu.memory_space<vmem>>, vector<16x8xf32>
    %cst_15 = arith.constant dense<0.000000e+00> : vector<128x8xf32>
    %11 = tpu.matmul %9, %10, %cst_15 {dimension_numbers = #tpu.dot_dimension_numbers<[1], [0], [0], [1], [0, 0, 1, 1], [], []>} : vector<128x16xf32>, vector<16x8xf32>, vector<128x8xf32> -> vector<128x8xf32>
    %12 = vector.shape_cast %11 : vector<128x8xf32> to vector<2x8x8x8xf32>
    %cst_16 = arith.constant dense<0xFF800000> : vector<2x8x8xf32>
    %13 = vector.multi_reduction <maximumf>, %12, %cst_16 [1] : vector<2x8x8x8xf32> to vector<2x8x8xf32>
    %14 = vector.shape_cast %13 : vector<2x8x8xf32> to vector<2x1x8x8xf32>
    %15 = vector.broadcast %14 : vector<2x1x8x8xf32> to vector<2x8x8x8xf32>
    %16 = arith.subf %12, %15 : vector<2x8x8x8xf32>
    %17 = math.exp %16 : vector<2x8x8x8xf32>
    %cst_17 = arith.constant dense<0.000000e+00> : vector<2x8x8xf32>
    %18 = vector.multi_reduction <add>, %17, %cst_17 [1] : vector<2x8x8x8xf32> to vector<2x8x8xf32>
    %19 = vector.shape_cast %18 : vector<2x8x8xf32> to vector<2x1x8x8xf32>
    %20 = tpu.reciprocal %19 {approx = true} : vector<2x1x8x8xf32> -> vector<2x1x8x8xf32>
    %21 = vector.broadcast %20 : vector<2x1x8x8xf32> to vector<2x8x8x8xf32>
    %22 = arith.mulf %17, %21 : vector<2x8x8x8xf32>
    %cst_18 = arith.constant 1.000000e+00 : f32
    %23 = vector.broadcast %cst_18 : f32 to vector<2x8x8x8xf32>
    %24 = arith.subf %23, %22 : vector<2x8x8x8xf32>
    %cst_19 = arith.constant dense<0xFF800000> : vector<2x8x8xf32>
    %25 = vector.multi_reduction <maximumf>, %24, %cst_19 [1] : vector<2x8x8x8xf32> to vector<2x8x8xf32>
    %26 = vector.shape_cast %25 : vector<2x8x8xf32> to vector<2x1x8x8xf32>
    %27 = vector.broadcast %26 : vector<2x1x8x8xf32> to vector<2x8x8x8xf32>
    %28 = arith.subf %24, %27 : vector<2x8x8x8xf32>
    %29 = math.exp %28 : vector<2x8x8x8xf32>
    %cst_20 = arith.constant dense<0.000000e+00> : vector<2x8x8xf32>
    %30 = vector.multi_reduction <add>, %29, %cst_20 [1] : vector<2x8x8x8xf32> to vector<2x8x8xf32>
    %31 = vector.shape_cast %30 : vector<2x8x8xf32> to vector<2x1x8x8xf32>
    %32 = tpu.reciprocal %31 {approx = true} : vector<2x1x8x8xf32> -> vector<2x1x8x8xf32>
    %33 = vector.broadcast %32 : vector<2x1x8x8xf32> to vector<2x8x8x8xf32>
    %34 = arith.mulf %29, %33 : vector<2x8x8x8xf32>
    %35 = vector.shape_cast %34 : vector<2x8x8x8xf32> to vector<128x8xf32>
    %c0_21 = arith.constant 0 : index
    %c0_22 = arith.constant 0 : index
    %36 = vector.load %arg6[%c0_21, %c0_22] : memref<8x16xf32, #tpu.memory_space<vmem>>, vector<8x16xf32>
    %cst_23 = arith.constant dense<0.000000e+00> : vector<128x16xf32>
    %37 = tpu.matmul %35, %36, %cst_23 {dimension_numbers = #tpu.dot_dimension_numbers<[1], [0], [0], [1], [0, 0, 1, 1], [], []>} : vector<128x8xf32>, vector<8x16xf32>, vector<128x16xf32> -> vector<128x16xf32>
    %38 = arith.mulf %37, %8 : vector<128x16xf32>
    %39 = vector.shape_cast %38 : vector<128x16xf32> to vector<2x8x8x16xf32>
    %cst_24 = arith.constant dense<0.000000e+00> : vector<2x8x16xf32>
    %40 = vector.multi_reduction <add>, %39, %cst_24 [1] : vector<2x8x8x16xf32> to vector<2x8x16xf32>
    %41 = vector.shape_cast %2 : vector<128x16xf32> to vector<2x8x8x16xf32>
    %42 = vector.extract_strided_slice %41 {offsets = [0, 0, 0, 0], sizes = [2, 1, 8, 16], strides = [1, 1, 1, 1]} : vector<2x8x8x16xf32> to vector<2x1x8x16xf32>
    %43 = vector.shape_cast %42 : vector<2x1x8x16xf32> to vector<2x8x16xf32>
    %44 = arith.addf %43, %40 : vector<2x8x16xf32>
    %c0_25 = arith.constant 0 : index
    %c0_26 = arith.constant 0 : index
    %c0_27 = arith.constant 0 : index
    %45 = vector.load %arg16[%c0_25, %c0_26, %c0_27] : memref<2x8x16xf32, #tpu.memory_space<vmem>>, vector<2x8x16xf32>
    tpu.vector_store %arg16[%c0_25, %c0_26, %c0_27], %44 {strides = array<i32>} : memref<2x8x16xf32, #tpu.memory_space<vmem>>, vector<2x8x16xf32>,
    %c0_28 = arith.constant 0 : index
    %c0_29 = arith.constant 0 : index
    %46 = vector.load %arg8[%c0_28, %c0_29] : memref<1x192xf32, #tpu.memory_space<vmem>>, vector<1x192xf32>
    %c0_30 = arith.constant 0 : index
    %c0_31 = arith.constant 0 : index
    %c0_32 = arith.constant 0 : index
    %47 = vector.load %arg16[%c0_30, %c0_31, %c0_32] : memref<2x8x16xf32, #tpu.memory_space<vmem>>, vector<2x1x16xf32>
    %48 = vector.shape_cast %47 : vector<2x1x16xf32> to vector<2x16xf32>
    %c0_33 = arith.constant 0 : index
    %c0_34 = arith.constant 0 : index
    %c0_35 = arith.constant 0 : index
    %49 = vector.load %arg7[%c0_33, %c0_34, %c0_35] : memref<8x16x192xf32, #tpu.memory_space<vmem>>, vector<1x16x192xf32>
    %50 = vector.shape_cast %49 : vector<1x16x192xf32> to vector<16x192xf32>
    %cst_36 = arith.constant dense<0.000000e+00> : vector<2x192xf32>
    %51 = tpu.matmul %48, %50, %cst_36 {dimension_numbers = #tpu.dot_dimension_numbers<[1], [0], [0], [1], [0, 0, 1, 1], [], []>} : vector<2x16xf32>, vector<16x192xf32>, vector<2x192xf32> -> vector<2x192xf32>
    %52 = vector.broadcast %46 : vector<1x192xf32> to vector<2x192xf32>
    %53 = arith.addf %52, %51 : vector<2x192xf32>
    %c0_37 = arith.constant 0 : index
    %c1 = arith.constant 1 : index
    %c0_38 = arith.constant 0 : index
    %54 = vector.load %arg16[%c0_37, %c1, %c0_38] : memref<2x8x16xf32, #tpu.memory_space<vmem>>, vector<2x1x16xf32>
    %55 = vector.shape_cast %54 : vector<2x1x16xf32> to vector<2x16xf32>
    %c1_39 = arith.constant 1 : index
    %c0_40 = arith.constant 0 : index
    %c0_41 = arith.constant 0 : index
    %56 = vector.load %arg7[%c1_39, %c0_40, %c0_41] : memref<8x16x192xf32, #tpu.memory_space<vmem>>, vector<1x16x192xf32>
    %57 = vector.shape_cast %56 : vector<1x16x192xf32> to vector<16x192xf32>
    %cst_42 = arith.constant dense<0.000000e+00> : vector<2x192xf32>
    %58 = tpu.matmul %55, %57, %cst_42 {dimension_numbers = #tpu.dot_dimension_numbers<[1], [0], [0], [1], [0, 0, 1, 1], [], []>} : vector<2x16xf32>, vector<16x192xf32>, vector<2x192xf32> -> vector<2x192xf32>
    %59 = arith.addf %53, %58 : vector<2x192xf32>
    %c0_43 = arith.constant 0 : index
    %c2 = arith.constant 2 : index
    %c0_44 = arith.constant 0 : index
    %60 = vector.load %arg16[%c0_43, %c2, %c0_44] : memref<2x8x16xf32, #tpu.memory_space<vmem>>, vector<2x1x16xf32>
    %61 = vector.shape_cast %60 : vector<2x1x16xf32> to vector<2x16xf32>
    %c2_45 = arith.constant 2 : index
    %c0_46 = arith.constant 0 : index
    %c0_47 = arith.constant 0 : index
    %62 = vector.load %arg7[%c2_45, %c0_46, %c0_47] : memref<8x16x192xf32, #tpu.memory_space<vmem>>, vector<1x16x192xf32>
    %63 = vector.shape_cast %62 : vector<1x16x192xf32> to vector<16x192xf32>
    %cst_48 = arith.constant dense<0.000000e+00> : vector<2x192xf32>
    %64 = tpu.matmul %61, %63, %cst_48 {dimension_numbers = #tpu.dot_dimension_numbers<[1], [0], [0], [1], [0, 0, 1, 1], [], []>} : vector<2x16xf32>, vector<16x192xf32>, vector<2x192xf32> -> vector<2x192xf32>
    %65 = arith.addf %59, %64 : vector<2x192xf32>
    %c0_49 = arith.constant 0 : index
    %c3 = arith.constant 3 : index
    %c0_50 = arith.constant 0 : index
    %66 = vector.load %arg16[%c0_49, %c3, %c0_50] : memref<2x8x16xf32, #tpu.memory_space<vmem>>, vector<2x1x16xf32>
    %67 = vector.shape_cast %66 : vector<2x1x16xf32> to vector<2x16xf32>
    %c3_51 = arith.constant 3 : index
    %c0_52 = arith.constant 0 : index
    %c0_53 = arith.constant 0 : index
    %68 = vector.load %arg7[%c3_51, %c0_52, %c0_53] : memref<8x16x192xf32, #tpu.memory_space<vmem>>, vector<1x16x192xf32>
    %69 = vector.shape_cast %68 : vector<1x16x192xf32> to vector<16x192xf32>
    %cst_54 = arith.constant dense<0.000000e+00> : vector<2x192xf32>
    %70 = tpu.matmul %67, %69, %cst_54 {dimension_numbers = #tpu.dot_dimension_numbers<[1], [0], [0], [1], [0, 0, 1, 1], [], []>} : vector<2x16xf32>, vector<16x192xf32>, vector<2x192xf32> -> vector<2x192xf32>
    %71 = arith.addf %65, %70 : vector<2x192xf32>
    %c0_55 = arith.constant 0 : index
    %c4 = arith.constant 4 : index
    %c0_56 = arith.constant 0 : index
    %72 = vector.load %arg16[%c0_55, %c4, %c0_56] : memref<2x8x16xf32, #tpu.memory_space<vmem>>, vector<2x1x16xf32>
    %73 = vector.shape_cast %72 : vector<2x1x16xf32> to vector<2x16xf32>
    %c4_57 = arith.constant 4 : index
    %c0_58 = arith.constant 0 : index
    %c0_59 = arith.constant 0 : index
    %74 = vector.load %arg7[%c4_57, %c0_58, %c0_59] : memref<8x16x192xf32, #tpu.memory_space<vmem>>, vector<1x16x192xf32>
    %75 = vector.shape_cast %74 : vector<1x16x192xf32> to vector<16x192xf32>
    %cst_60 = arith.constant dense<0.000000e+00> : vector<2x192xf32>
    %76 = tpu.matmul %73, %75, %cst_60 {dimension_numbers = #tpu.dot_dimension_numbers<[1], [0], [0], [1], [0, 0, 1, 1], [], []>} : vector<2x16xf32>, vector<16x192xf32>, vector<2x192xf32> -> vector<2x192xf32>
    %77 = arith.addf %71, %76 : vector<2x192xf32>
    %c0_61 = arith.constant 0 : index
    %c5 = arith.constant 5 : index
    %c0_62 = arith.constant 0 : index
    %78 = vector.load %arg16[%c0_61, %c5, %c0_62] : memref<2x8x16xf32, #tpu.memory_space<vmem>>, vector<2x1x16xf32>
    %79 = vector.shape_cast %78 : vector<2x1x16xf32> to vector<2x16xf32>
    %c5_63 = arith.constant 5 : index
    %c0_64 = arith.constant 0 : index
    %c0_65 = arith.constant 0 : index
    %80 = vector.load %arg7[%c5_63, %c0_64, %c0_65] : memref<8x16x192xf32, #tpu.memory_space<vmem>>, vector<1x16x192xf32>
    %81 = vector.shape_cast %80 : vector<1x16x192xf32> to vector<16x192xf32>
    %cst_66 = arith.constant dense<0.000000e+00> : vector<2x192xf32>
    %82 = tpu.matmul %79, %81, %cst_66 {dimension_numbers = #tpu.dot_dimension_numbers<[1], [0], [0], [1], [0, 0, 1, 1], [], []>} : vector<2x16xf32>, vector<16x192xf32>, vector<2x192xf32> -> vector<2x192xf32>
    %83 = arith.addf %77, %82 : vector<2x192xf32>
    %c0_67 = arith.constant 0 : index
    %c6 = arith.constant 6 : index
    %c0_68 = arith.constant 0 : index
    %84 = vector.load %arg16[%c0_67, %c6, %c0_68] : memref<2x8x16xf32, #tpu.memory_space<vmem>>, vector<2x1x16xf32>
    %85 = vector.shape_cast %84 : vector<2x1x16xf32> to vector<2x16xf32>
    %c6_69 = arith.constant 6 : index
    %c0_70 = arith.constant 0 : index
    %c0_71 = arith.constant 0 : index
    %86 = vector.load %arg7[%c6_69, %c0_70, %c0_71] : memref<8x16x192xf32, #tpu.memory_space<vmem>>, vector<1x16x192xf32>
    %87 = vector.shape_cast %86 : vector<1x16x192xf32> to vector<16x192xf32>
    %cst_72 = arith.constant dense<0.000000e+00> : vector<2x192xf32>
    %88 = tpu.matmul %85, %87, %cst_72 {dimension_numbers = #tpu.dot_dimension_numbers<[1], [0], [0], [1], [0, 0, 1, 1], [], []>} : vector<2x16xf32>, vector<16x192xf32>, vector<2x192xf32> -> vector<2x192xf32>
    %89 = arith.addf %83, %88 : vector<2x192xf32>
    %c0_73 = arith.constant 0 : index
    %c7 = arith.constant 7 : index
    %c0_74 = arith.constant 0 : index
    %90 = vector.load %arg16[%c0_73, %c7, %c0_74] : memref<2x8x16xf32, #tpu.memory_space<vmem>>, vector<2x1x16xf32>
    %91 = vector.shape_cast %90 : vector<2x1x16xf32> to vector<2x16xf32>
    %c7_75 = arith.constant 7 : index
    %c0_76 = arith.constant 0 : index
    %c0_77 = arith.constant 0 : index
    %92 = vector.load %arg7[%c7_75, %c0_76, %c0_77] : memref<8x16x192xf32, #tpu.memory_space<vmem>>, vector<1x16x192xf32>
    %93 = vector.shape_cast %92 : vector<1x16x192xf32> to vector<16x192xf32>
    %cst_78 = arith.constant dense<0.000000e+00> : vector<2x192xf32>
    %94 = tpu.matmul %91, %93, %cst_78 {dimension_numbers = #tpu.dot_dimension_numbers<[1], [0], [0], [1], [0, 0, 1, 1], [], []>} : vector<2x16xf32>, vector<16x192xf32>, vector<2x192xf32> -> vector<2x192xf32>
    %95 = arith.addf %89, %94 : vector<2x192xf32>
    %cst_79 = arith.constant 0.000000e+00 : f32
    %96 = vector.broadcast %cst_79 : f32 to vector<2x192xf32>
    %97 = arith.maximumf %95, %96 : vector<2x192xf32>
    %c0_80 = arith.constant 0 : index
    %c0_81 = arith.constant 0 : index
    %98 = vector.load %arg9[%c0_80, %c0_81] : memref<192x32xf32, #tpu.memory_space<vmem>>, vector<192x32xf32>
    %cst_82 = arith.constant dense<0.000000e+00> : vector<2x32xf32>
    %99 = tpu.matmul %97, %98, %cst_82 {dimension_numbers = #tpu.dot_dimension_numbers<[1], [0], [0], [1], [0, 0, 1, 1], [], []>} : vector<2x192xf32>, vector<192x32xf32>, vector<2x32xf32> -> vector<2x32xf32>
    %c0_83 = arith.constant 0 : index
    %c0_84 = arith.constant 0 : index
    %100 = vector.load %arg10[%c0_83, %c0_84] : memref<1x32xf32, #tpu.memory_space<vmem>>, vector<1x32xf32>
    %101 = vector.broadcast %100 : vector<1x32xf32> to vector<2x32xf32>
    %102 = arith.addf %99, %101 : vector<2x32xf32>
    %cst_85 = arith.constant 0.000000e+00 : f32
    %103 = vector.broadcast %cst_85 : f32 to vector<2x32xf32>
    %104 = arith.maximumf %102, %103 : vector<2x32xf32>
    %c0_86 = arith.constant 0 : index
    %c0_87 = arith.constant 0 : index
    %105 = vector.load %arg11[%c0_86, %c0_87] : memref<32x8xf32, #tpu.memory_space<vmem>>, vector<32x8xf32>
    %cst_88 = arith.constant dense<0.000000e+00> : vector<2x8xf32>
    %106 = tpu.matmul %104, %105, %cst_88 {dimension_numbers = #tpu.dot_dimension_numbers<[1], [0], [0], [1], [0, 0, 1, 1], [], []>} : vector<2x32xf32>, vector<32x8xf32>, vector<2x8xf32> -> vector<2x8xf32>
    %c0_89 = arith.constant 0 : index
    %c0_90 = arith.constant 0 : index
    %107 = vector.load %arg12[%c0_89, %c0_90] : memref<1x8xf32, #tpu.memory_space<vmem>>, vector<1x8xf32>
    %108 = vector.broadcast %107 : vector<1x8xf32> to vector<2x8xf32>
    %109 = arith.addf %106, %108 : vector<2x8xf32>
    %cst_91 = arith.constant 0.000000e+00 : f32
    %110 = vector.broadcast %cst_91 : f32 to vector<2x8xf32>
    %111 = arith.maximumf %109, %110 : vector<2x8xf32>
    %c0_92 = arith.constant 0 : index
    %c0_93 = arith.constant 0 : index
    %112 = vector.load %arg13[%c0_92, %c0_93] : memref<8x2xf32, #tpu.memory_space<vmem>>, vector<8x2xf32>
    %cst_94 = arith.constant dense<0.000000e+00> : vector<2x2xf32>
    %113 = tpu.matmul %111, %112, %cst_94 {dimension_numbers = #tpu.dot_dimension_numbers<[1], [0], [0], [1], [0, 0, 1, 1], [], []>} : vector<2x8xf32>, vector<8x2xf32>, vector<2x2xf32> -> vector<2x2xf32>
    %c0_95 = arith.constant 0 : index
    %c0_96 = arith.constant 0 : index
    %114 = vector.load %arg14[%c0_95, %c0_96] : memref<1x2xf32, #tpu.memory_space<vmem>>, vector<1x2xf32>
    %115 = vector.broadcast %114 : vector<1x2xf32> to vector<2x2xf32>
    %116 = arith.addf %113, %115 : vector<2x2xf32>
    %c0_97 = arith.constant 0 : index
    %c0_98 = arith.constant 0 : index
    %117 = vector.load %arg15[%c0_97, %c0_98] : memref<2x2xf32, #tpu.memory_space<vmem>>, vector<2x2xf32>
    tpu.vector_store %arg15[%c0_97, %c0_98], %116 {strides = array<i32>} : memref<2x2xf32, #tpu.memory_space<vmem>>, vector<2x2xf32>,
    return
  }
}

</mosaic_0001>

<llo_original>
// kernel: contrastive_attention_network.1
$region0: #{contrastive_attention_network.1}
  #allocation0 [shape = 'u32[]', space=smem, size = 0x4, offset = 0x4, fixed_abs, tag = 'smem constant byte address 0x4 - core index']
  #allocation1 [shape = 'u32[144,128]{1,0:T(1,128)}', space=vmem, size = 0x12000, scoped, tag = 'internal scratch']
  #allocation2 [shape = 'f32[2,8,16]{2,1,0:T(8,128)}', space=vmem, size = 0x2000, scoped, tag = 'scratch operand']
  %s0 = inlined_call_operand.vmem [shape: f32[128,32], index: 0, kind: input, shape index: {}]
  %s1 = inlined_call_operand.vmem [shape: f32[128,16], index: 1, kind: input, shape index: {}]
  %s2 = inlined_call_operand.vmem [shape: f32[32,16], index: 2, kind: input, shape index: {}]
  %s3 = inlined_call_operand.vmem [shape: f32[16,16], index: 3, kind: input, shape index: {}]
  %s4 = inlined_call_operand.vmem [shape: f32[16,16], index: 4, kind: input, shape index: {}]
  %s5 = inlined_call_operand.vmem [shape: f32[16,8], index: 5, kind: input, shape index: {}]
  %s6 = inlined_call_operand.vmem [shape: f32[8,16], index: 6, kind: input, shape index: {}]
  %s7 = inlined_call_operand.vmem [shape: f32[8,16,192], index: 7, kind: input, shape index: {}]
  %s8 = inlined_call_operand.vmem [shape: f32[1,192], index: 8, kind: input, shape index: {}]
  %s9 = inlined_call_operand.vmem [shape: f32[192,32], index: 9, kind: input, shape index: {}]
  %s10 = inlined_call_operand.vmem [shape: f32[1,32], index: 10, kind: input, shape index: {}]
  %s11 = inlined_call_operand.vmem [shape: f32[32,8], index: 11, kind: input, shape index: {}]
  %s12 = inlined_call_operand.vmem [shape: f32[1,8], index: 12, kind: input, shape index: {}]
  %s13 = inlined_call_operand.vmem [shape: f32[8,2], index: 13, kind: input, shape index: {}]
  %s14 = inlined_call_operand.vmem [shape: f32[1,2], index: 14, kind: input, shape index: {}]
  %s15 = inlined_call_operand.hbm [shape: f32[2,2], index: 15, kind: output, shape index: {}]
  %s16 = sld [smem:[#allocation0]]
  $region70: #{contrastive_attention_network.1} parent=0
    _
  %s18 = ssub.s32 1, %s16
  %s19 = scalar_select 0, %s18, %s16
  $region1: #{contrastive_attention_network.1} parent=0
    #allocation3 [shape = 'u8[1024]{0}', space=vmem, size = 0x400, scoped, tag = 'output window, operand 0, single buffered']
    #allocation4 [shape = 's32[1]{0}', space=sflag, size = 0x4, scoped, tag = 'scoped memory for contrastive_attention_network.1']
    %20 = vsyncpa [#allocation4], 0
    // Predicated region
    $region2: #{contrastive_attention_network.1} parent=1 // pred_check
      _
    $region3: #{contrastive_attention_network.1} parent=1 // pred_check_branch
      %22 = sbr.rel (0) target = $region5
    $region4: #{contrastive_attention_network.1} parent=1 // pred_region
      _
    $region5: #{contrastive_attention_network.1} parent=1 // pred_fallthru
      _
    // Predicated region
    $region6: #{contrastive_attention_network.1} parent=1 // pred_check
      _
    $region7: #{contrastive_attention_network.1} parent=1 // pred_check_branch
      %24 = sbr.rel (0) target = $region9
    $region8: #{contrastive_attention_network.1} parent=1 // pred_region
      _
    $region9: #{contrastive_attention_network.1} parent=1 // pred_fallthru
      _
    // Predicated region
    $region10: #{contrastive_attention_network.1} parent=1 // pred_check
      _
    $region11: #{contrastive_attention_network.1} parent=1 // pred_check_branch
      %26 = sbr.rel (0) target = $region13
    $region12: #{contrastive_attention_network.1} parent=1 // pred_region
      _
    $region13: #{contrastive_attention_network.1} parent=1 // pred_fallthru
      _
    // Predicated region
    $region14: #{contrastive_attention_network.1} parent=1 // pred_check
      _
    $region15: #{contrastive_attention_network.1} parent=1 // pred_check_branch
      %28 = sbr.rel (0) target = $region17
    $region16: #{contrastive_attention_network.1} parent=1 // pred_region
      _
    $region17: #{contrastive_attention_network.1} parent=1 // pred_fallthru
      _
    // Predicated region
    $region18: #{contrastive_attention_network.1} parent=1 // pred_check
      _
    $region19: #{contrastive_attention_network.1} parent=1 // pred_check_branch
      %30 = sbr.rel (0) target = $region21
    $region20: #{contrastive_attention_network.1} parent=1 // pred_region
      _
    $region21: #{contrastive_attention_network.1} parent=1 // pred_fallthru
      _
    // Predicated region
    $region22: #{contrastive_attention_network.1} parent=1 // pred_check
      _
    $region23: #{contrastive_attention_network.1} parent=1 // pred_check_branch
      %32 = sbr.rel (0) target = $region25
    $region24: #{contrastive_attention_network.1} parent=1 // pred_region
      _
    $region25: #{contrastive_attention_network.1} parent=1 // pred_fallthru
      _
    // Predicated region
    $region26: #{contrastive_attention_network.1} parent=1 // pred_check
      _
    $region27: #{contrastive_attention_network.1} parent=1 // pred_check_branch
      %34 = sbr.rel (0) target = $region29
    $region28: #{contrastive_attention_network.1} parent=1 // pred_region
      _
    $region29: #{contrastive_attention_network.1} parent=1 // pred_fallthru
      _
    // Predicated region
    $region30: #{contrastive_attention_network.1} parent=1 // pred_check
      _
    $region31: #{contrastive_attention_network.1} parent=1 // pred_check_branch
      %36 = sbr.rel (0) target = $region33
    $region32: #{contrastive_attention_network.1} parent=1 // pred_region
      _
    $region33: #{contrastive_attention_network.1} parent=1 // pred_fallthru
      _
    // Predicated region
    $region34: #{contrastive_attention_network.1} parent=1 // pred_check
      _
    $region35: #{contrastive_attention_network.1} parent=1 // pred_check_branch
      %38 = sbr.rel (0) target = $region37
    $region36: #{contrastive_attention_network.1} parent=1 // pred_region
      _
    $region37: #{contrastive_attention_network.1} parent=1 // pred_fallthru
      _
    // Predicated region
    $region38: #{contrastive_attention_network.1} parent=1 // pred_check
      _
    $region39: #{contrastive_attention_network.1} parent=1 // pred_check_branch
      %40 = sbr.rel (0) target = $region41
    $region40: #{contrastive_attention_network.1} parent=1 // pred_region
      _
    $region41: #{contrastive_attention_network.1} parent=1 // pred_fallthru
      _
    // Predicated region
    $region42: #{contrastive_attention_network.1} parent=1 // pred_check
      _
    $region43: #{contrastive_attention_network.1} parent=1 // pred_check_branch
      %42 = sbr.rel (0) target = $region45
    $region44: #{contrastive_attention_network.1} parent=1 // pred_region
      _
    $region45: #{contrastive_attention_network.1} parent=1 // pred_fallthru
      _
    // Predicated region
    $region46: #{contrastive_attention_network.1} parent=1 // pred_check
      _
    $region47: #{contrastive_attention_network.1} parent=1 // pred_check_branch
      %44 = sbr.rel (0) target = $region49
    $region48: #{contrastive_attention_network.1} parent=1 // pred_region
      _
    $region49: #{contrastive_attention_network.1} parent=1 // pred_fallthru
      _
    // Predicated region
    $region50: #{contrastive_attention_network.1} parent=1 // pred_check
      _
    $region51: #{contrastive_attention_network.1} parent=1 // pred_check_branch
      %46 = sbr.rel (0) target = $region53
    $region52: #{contrastive_attention_network.1} parent=1 // pred_region
      _
    $region53: #{contrastive_attention_network.1} parent=1 // pred_fallthru
      _
    // Predicated region
    $region54: #{contrastive_attention_network.1} parent=1 // pred_check
      _
    $region55: #{contrastive_attention_network.1} parent=1 // pred_check_branch
      %48 = sbr.rel (0) target = $region57
    $region56: #{contrastive_attention_network.1} parent=1 // pred_region
      _
    $region57: #{contrastive_attention_network.1} parent=1 // pred_fallthru
      _
    // Predicated region
    $region58: #{contrastive_attention_network.1} parent=1 // pred_check
      _
    $region59: #{contrastive_attention_network.1} parent=1 // pred_check_branch
      %50 = sbr.rel (0) target = $region61
    $region60: #{contrastive_attention_network.1} parent=1 // pred_region
      _
    $region61: #{contrastive_attention_network.1} parent=1 // pred_fallthru
      _
    %v51 = vld [vmem:[%s0] sm:$0xff]
    %v52 = vld [vmem:[%s0 + $0x8] sm:$0xff]
    %v53 = vld [vmem:[%s0 + $0x10] sm:$0xff]
    %v54 = vld [vmem:[%s0 + $0x18] sm:$0xff]
    %v55 = vld [vmem:[%s0 + $0x20] sm:$0xff]
    %v56 = vld [vmem:[%s0 + $0x28] sm:$0xff]
    %v57 = vld [vmem:[%s0 + $0x30] sm:$0xff]
    %v58 = vld [vmem:[%s0 + $0x38] sm:$0xff]
    %v59 = vld [vmem:[%s0 + $0x40] sm:$0xff]
    %v60 = vld [vmem:[%s0 + $0x48] sm:$0xff]
    %v61 = vld [vmem:[%s0 + $0x50] sm:$0xff]
    %v62 = vld [vmem:[%s0 + $0x58] sm:$0xff]
    %v63 = vld [vmem:[%s0 + $0x60] sm:$0xff]
    %v64 = vld [vmem:[%s0 + $0x68] sm:$0xff]
    %v65 = vld [vmem:[%s0 + $0x70] sm:$0xff]
    %v66 = vld [vmem:[%s0 + $0x78] sm:$0xff]
    %v67 = vld [vmem:[%s2] sm:$0xff]
    %v68 = vld [vmem:[%s2 + $0x8] sm:$0xff]
    %v69 = vld [vmem:[%s2 + $0x10] sm:$0xff]
    %v70 = vld [vmem:[%s2 + $0x18] sm:$0xff]
    %vm71 = vcmask 261120
    %v73 = vsel %vm71, %v51, 0
    %v76 = vsel %vm71, %v52, 0
    %v79 = vsel %vm71, %v53, 0
    %v82 = vsel %vm71, %v54, 0
    %v85 = vsel %vm71, %v55, 0
    %v88 = vsel %vm71, %v56, 0
    %v91 = vsel %vm71, %v57, 0
    %v94 = vsel %vm71, %v58, 0
    %v97 = vsel %vm71, %v59, 0
    %v100 = vsel %vm71, %v60, 0
    %v103 = vsel %vm71, %v61, 0
    %v106 = vsel %vm71, %v62, 0
    %v109 = vsel %vm71, %v63, 0
    %v112 = vsel %vm71, %v64, 0
    %v115 = vsel %vm71, %v65, 0
    %v118 = vsel %vm71, %v66, 0
    %120 = vmatprep.subr.mxu0 0.0
    %121 = vmatpush1.msra.mxu0 %v67
    %122 = vmatprep.subr.mxu0 0.0
    %123 = vmatpush1.msra.mxu0 %v68
    %124 = vmatprep.subr.mxu0 0.0
    %125 = vmatpush1.msra.mxu0 %v69
    %126 = vmatprep.subr.mxu0 0.0
    %127 = vmatpush1.msra.mxu0 %v70
    %128 = vmatprep.subr.mxu0 0.0
    %129 = vmatpush1.msra.mxu0 0.0
    %130 = vmatprep.subr.mxu0 0.0
    %131 = vmatpush1.msra.mxu0 0.0
    %132 = vmatprep.subr.mxu0 0.0
    %133 = vmatpush1.msra.mxu0 0.0
    %134 = vmatprep.subr.mxu0 0.0
    %135 = vmatpush1.msra.mxu0 0.0
    %136 = vmatprep.subr.mxu0 0.0
    %137 = vmatpush1.msra.mxu0 0.0
    %138 = vmatprep.subr.mxu0 0.0
    %139 = vmatpush1.msra.mxu0 0.0
    %140 = vmatprep.subr.mxu0 0.0
    %141 = vmatpush1.msra.mxu0 0.0
    %142 = vmatprep.subr.mxu0 0.0
    %143 = vmatpush1.msra.mxu0 0.0
    %144 = vmatprep.subr.mxu0 0.0
    %145 = vmatpush1.msra.mxu0 0.0
    %146 = vmatprep.subr.mxu0 0.0
    %147 = vmatpush1.msra.mxu0 0.0
    %148 = vmatprep.subr.mxu0 0.0
    %149 = vmatpush1.msra.mxu0 0.0
    %150 = vmatprep.subr.mxu0 0.0
    %151 = vmatpush1.msra.mxu0 0.0
    %152 = vmatprep.subr.mxu0 0.0
    %153 = vmatpush1.msra.mxu0 0.0
    %154 = vmatprep.subr.mxu0 0.0
    %155 = vmatpush1.msra.mxu0 0.0
    %156 = vmatprep.subr.mxu0 0.0
    %157 = vmatpush1.msra.mxu0 0.0
    %158 = vmatprep.subr.mxu0 0.0
    %159 = vmatpush1.msra.mxu0 0.0
    %160 = vmatprep.subr.mxu0 0.0
    %161 = vmatpush1.msra.mxu0 0.0
    %162 = vmatprep.subr.mxu0 0.0
    %163 = vmatpush1.msra.mxu0 0.0
    %164 = vmatprep.subr.mxu0 0.0
    %165 = vmatpush1.msra.mxu0 0.0
    %166 = vmatprep.subr.mxu0 0.0
    %167 = vmatpush1.msra.mxu0 0.0
    %168 = vmatprep.subr.mxu0 0.0
    %169 = vmatpush1.msra.mxu0 0.0
    %170 = vmatprep.subr.mxu0 0.0
    %171 = vmatpush1.msra.mxu0 0.0
    %172 = vmatprep.subr.mxu0 0.0
    %173 = vmatpush1.msra.mxu0 0.0
    %174 = vmatprep.subr.mxu0 0.0
    %175 = vmatpush1.msra.mxu0 0.0
    %176 = vmatprep.subr.mxu0 0.0
    %177 = vmatpush1.msra.mxu0 0.0
    %178 = vmatprep.subr.mxu0 0.0
    %179 = vmatpush1.msra.mxu0 0.0
    %180 = vmatprep.subr.mxu0 0.0
    %181 = vmatpush1.msra.mxu0 0.0
    %182 = vmatprep.subr.mxu0 0.0
    %183 = vmatpush1.msra.mxu0 0.0
    %184 = vmatprep.mubr.f32.mxu0 0.0
    %185 = vmatmul.mubr.f32.gmra.mrb[0].mxu0 %v73
    %v186 = vpop.f32.mrb[0].mxu0
    %v187 = vadd.f32 0.0, %v186
    %v188 = vpop.f32.mrb[0].mxu0
    %189 = vmatprep.mubr.f32.mxu0 0.0
    %190 = vmatmul.mubr.f32.gmra.mrb[0].mxu0 %v76
    %v191 = vpop.f32.mrb[0].mxu0
    %v192 = vadd.f32 0.0, %v191
    %v193 = vpop.f32.mrb[0].mxu0
    %194 = vmatprep.mubr.f32.mxu0 0.0
    %195 = vmatmul.mubr.f32.gmra.mrb[0].mxu0 %v79
    %v196 = vpop.f32.mrb[0].mxu0
    %v197 = vadd.f32 0.0, %v196
    %v198 = vpop.f32.mrb[0].mxu0
    %199 = vmatprep.mubr.f32.mxu0 0.0
    %200 = vmatmul.mubr.f32.gmra.mrb[0].mxu0 %v82
    %v201 = vpop.f32.mrb[0].mxu0
    %v202 = vadd.f32 0.0, %v201
    %v203 = vpop.f32.mrb[0].mxu0
    %204 = vmatprep.mubr.f32.mxu0 0.0
    %205 = vmatmul.mubr.f32.gmra.mrb[0].mxu0 %v85
    %v206 = vpop.f32.mrb[0].mxu0
    %v207 = vadd.f32 0.0, %v206
    %v208 = vpop.f32.mrb[0].mxu0
    %209 = vmatprep.mubr.f32.mxu0 0.0
    %210 = vmatmul.mubr.f32.gmra.mrb[0].mxu0 %v88
    %v211 = vpop.f32.mrb[0].mxu0
    %v212 = vadd.f32 0.0, %v211
    %v213 = vpop.f32.mrb[0].mxu0
    %214 = vmatprep.mubr.f32.mxu0 0.0
    %215 = vmatmul.mubr.f32.gmra.mrb[0].mxu0 %v91
    %v216 = vpop.f32.mrb[0].mxu0
    %v217 = vadd.f32 0.0, %v216
    %v218 = vpop.f32.mrb[0].mxu0
    %219 = vmatprep.mubr.f32.mxu0 0.0
    %220 = vmatmul.mubr.f32.gmra.mrb[0].mxu0 %v94
    %v221 = vpop.f32.mrb[0].mxu0
    %v222 = vadd.f32 0.0, %v221
    %v223 = vpop.f32.mrb[0].mxu0
    %224 = vmatprep.mubr.f32.mxu0 0.0
    %225 = vmatmul.mubr.f32.gmra.mrb[0].mxu0 %v97
    %v226 = vpop.f32.mrb[0].mxu0
    %v227 = vadd.f32 0.0, %v226
    %v228 = vpop.f32.mrb[0].mxu0
    %229 = vmatprep.mubr.f32.mxu0 0.0
    %230 = vmatmul.mubr.f32.gmra.mrb[0].mxu0 %v100
    %v231 = vpop.f32.mrb[0].mxu0
    %v232 = vadd.f32 0.0, %v231
    %v233 = vpop.f32.mrb[0].mxu0
    %234 = vmatprep.mubr.f32.mxu0 0.0
    %235 = vmatmul.mubr.f32.gmra.mrb[0].mxu0 %v103
    %v236 = vpop.f32.mrb[0].mxu0
    %v237 = vadd.f32 0.0, %v236
    %v238 = vpop.f32.mrb[0].mxu0
    %239 = vmatprep.mubr.f32.mxu0 0.0
    %240 = vmatmul.mubr.f32.gmra.mrb[0].mxu0 %v106
    %v241 = vpop.f32.mrb[0].mxu0
    %v242 = vadd.f32 0.0, %v241
    %v243 = vpop.f32.mrb[0].mxu0
    %244 = vmatprep.mubr.f32.mxu0 0.0
    %245 = vmatmul.mubr.f32.gmra.mrb[0].mxu0 %v109
    %v246 = vpop.f32.mrb[0].mxu0
    %v247 = vadd.f32 0.0, %v246
    %v248 = vpop.f32.mrb[0].mxu0
    %249 = vmatprep.mubr.f32.mxu0 0.0
    %250 = vmatmul.mubr.f32.gmra.mrb[0].mxu0 %v112
    %v251 = vpop.f32.mrb[0].mxu0
    %v252 = vadd.f32 0.0, %v251
    %v253 = vpop.f32.mrb[0].mxu0
    %254 = vmatprep.mubr.f32.mxu0 0.0
    %255 = vmatmul.mubr.f32.gmra.mrb[0].mxu0 %v115
    %v256 = vpop.f32.mrb[0].mxu0
    %v257 = vadd.f32 0.0, %v256
    %v258 = vpop.f32.mrb[0].mxu0
    %259 = vmatprep.mubr.f32.mxu0 0.0
    %260 = vmatmul.mubr.f32.gmra.mrb[0].mxu0 %v118
    %v261 = vpop.f32.mrb[0].mxu0
    %v262 = vadd.f32 0.0, %v261
    %v263 = vpop.f32.mrb[0].mxu0
    %264 = vdwg.mxu0
    %v265 = vld [vmem:[%s1] sm:$0xff]
    %v266 = vld [vmem:[%s1 + $0x8] sm:$0xff]
    %v267 = vld [vmem:[%s1 + $0x10] sm:$0xff]
    %v268 = vld [vmem:[%s1 + $0x18] sm:$0xff]
    %v269 = vld [vmem:[%s1 + $0x20] sm:$0xff]
    %v270 = vld [vmem:[%s1 + $0x28] sm:$0xff]
    %v271 = vld [vmem:[%s1 + $0x30] sm:$0xff]
    %v272 = vld [vmem:[%s1 + $0x38] sm:$0xff]
    %v273 = vld [vmem:[%s1 + $0x40] sm:$0xff]
    %v274 = vld [vmem:[%s1 + $0x48] sm:$0xff]
    %v275 = vld [vmem:[%s1 + $0x50] sm:$0xff]
    %v276 = vld [vmem:[%s1 + $0x58] sm:$0xff]
    %v277 = vld [vmem:[%s1 + $0x60] sm:$0xff]
    %v278 = vld [vmem:[%s1 + $0x68] sm:$0xff]
    %v279 = vld [vmem:[%s1 + $0x70] sm:$0xff]
    %v280 = vld [vmem:[%s1 + $0x78] sm:$0xff]
    %v281 = vld [vmem:[%s3] sm:$0xff]
    %v282 = vld [vmem:[%s3 + $0x8] sm:$0xff]
    %vm283 = vcmask 130048
    %v285 = vsel %vm283, %v265, 0
    %v288 = vsel %vm283, %v266, 0
    %v291 = vsel %vm283, %v267, 0
    %v294 = vsel %vm283, %v268, 0
    %v297 = vsel %vm283, %v269, 0
    %v300 = vsel %vm283, %v270, 0
    %v303 = vsel %vm283, %v271, 0
    %v306 = vsel %vm283, %v272, 0
    %v309 = vsel %vm283, %v273, 0
    %v312 = vsel %vm283, %v274, 0
    %v315 = vsel %vm283, %v275, 0
    %v318 = vsel %vm283, %v276, 0
    %v321 = vsel %vm283, %v277, 0
    %v324 = vsel %vm283, %v278, 0
    %v327 = vsel %vm283, %v279, 0
    %v330 = vsel %vm283, %v280, 0
    %332 = vmatprep.subr.mxu0 0.0
    %333 = vmatpush1.msra.mxu0 %v281
    %334 = vmatprep.subr.mxu0 0.0
    %335 = vmatpush1.msra.mxu0 %v282
    %336 = vmatprep.subr.mxu0 0.0
    %337 = vmatpush1.msra.mxu0 0.0
    %338 = vmatprep.subr.mxu0 0.0
    %339 = vmatpush1.msra.mxu0 0.0
    %340 = vmatprep.subr.mxu0 0.0
    %341 = vmatpush1.msra.mxu0 0.0
    %342 = vmatprep.subr.mxu0 0.0
    %343 = vmatpush1.msra.mxu0 0.0
    %344 = vmatprep.subr.mxu0 0.0
    %345 = vmatpush1.msra.mxu0 0.0
    %346 = vmatprep.subr.mxu0 0.0
    %347 = vmatpush1.msra.mxu0 0.0
    %348 = vmatprep.subr.mxu0 0.0
    %349 = vmatpush1.msra.mxu0 0.0
    %350 = vmatprep.subr.mxu0 0.0
    %351 = vmatpush1.msra.mxu0 0.0
    %352 = vmatprep.subr.mxu0 0.0
    %353 = vmatpush1.msra.mxu0 0.0
    %354 = vmatprep.subr.mxu0 0.0
    %355 = vmatpush1.msra.mxu0 0.0
    %356 = vmatprep.subr.mxu0 0.0
    %357 = vmatpush1.msra.mxu0 0.0
    %358 = vmatprep.subr.mxu0 0.0
    %359 = vmatpush1.msra.mxu0 0.0
    %360 = vmatprep.subr.mxu0 0.0
    %361 = vmatpush1.msra.mxu0 0.0
    %362 = vmatprep.subr.mxu0 0.0
    %363 = vmatpush1.msra.mxu0 0.0
    %364 = vmatprep.subr.mxu0 0.0
    %365 = vmatpush1.msra.mxu0 0.0
    %366 = vmatprep.subr.mxu0 0.0
    %367 = vmatpush1.msra.mxu0 0.0
    %368 = vmatprep.subr.mxu0 0.0
    %369 = vmatpush1.msra.mxu0 0.0
    %370 = vmatprep.subr.mxu0 0.0
    %371 = vmatpush1.msra.mxu0 0.0
    %372 = vmatprep.subr.mxu0 0.0
    %373 = vmatpush1.msra.mxu0 0.0
    %374 = vmatprep.subr.mxu0 0.0
    %375 = vmatpush1.msra.mxu0 0.0
    %376 = vmatprep.subr.mxu0 0.0
    %377 = vmatpush1.msra.mxu0 0.0
    %378 = vmatprep.subr.mxu0 0.0
    %379 = vmatpush1.msra.mxu0 0.0
    %380 = vmatprep.subr.mxu0 0.0
    %381 = vmatpush1.msra.mxu0 0.0
    %382 = vmatprep.subr.mxu0 0.0
    %383 = vmatpush1.msra.mxu0 0.0
    %384 = vmatprep.subr.mxu0 0.0
    %385 = vmatpush1.msra.mxu0 0.0
    %386 = vmatprep.subr.mxu0 0.0
    %387 = vmatpush1.msra.mxu0 0.0
    %388 = vmatprep.subr.mxu0 0.0
    %389 = vmatpush1.msra.mxu0 0.0
    %390 = vmatprep.subr.mxu0 0.0
    %391 = vmatpush1.msra.mxu0 0.0
    %392 = vmatprep.subr.mxu0 0.0
    %393 = vmatpush1.msra.mxu0 0.0
    %394 = vmatprep.subr.mxu0 0.0
    %395 = vmatpush1.msra.mxu0 0.0
    %396 = vmatprep.mubr.f32.mxu0 0.0
    %397 = vmatmul.mubr.f32.gmra.mrb[0].mxu0 %v285
    %v398 = vpop.f32.mrb[0].mxu0
    %v399 = vadd.f32 0.0, %v398
    %v400 = vpop.f32.mrb[0].mxu0
    %401 = vmatprep.mubr.f32.mxu0 0.0
    %402 = vmatmul.mubr.f32.gmra.mrb[0].mxu0 %v288
    %v403 = vpop.f32.mrb[0].mxu0
    %v404 = vadd.f32 0.0, %v403
    %v405 = vpop.f32.mrb[0].mxu0
    %406 = vmatprep.mubr.f32.mxu0 0.0
    %407 = vmatmul.mubr.f32.gmra.mrb[0].mxu0 %v291
    %v408 = vpop.f32.mrb[0].mxu0
    %v409 = vadd.f32 0.0, %v408
    %v410 = vpop.f32.mrb[0].mxu0
    %411 = vmatprep.mubr.f32.mxu0 0.0
    %412 = vmatmul.mubr.f32.gmra.mrb[0].mxu0 %v294
    %v413 = vpop.f32.mrb[0].mxu0
    %v414 = vadd.f32 0.0, %v413
    %v415 = vpop.f32.mrb[0].mxu0
    %416 = vmatprep.mubr.f32.mxu0 0.0
    %417 = vmatmul.mubr.f32.gmra.mrb[0].mxu0 %v297
    %v418 = vpop.f32.mrb[0].mxu0
    %v419 = vadd.f32 0.0, %v418
    %v420 = vpop.f32.mrb[0].mxu0
    %421 = vmatprep.mubr.f32.mxu0 0.0
    %422 = vmatmul.mubr.f32.gmra.mrb[0].mxu0 %v300
    %v423 = vpop.f32.mrb[0].mxu0
    %v424 = vadd.f32 0.0, %v423
    %v425 = vpop.f32.mrb[0].mxu0
    %426 = vmatprep.mubr.f32.mxu0 0.0
    %427 = vmatmul.mubr.f32.gmra.mrb[0].mxu0 %v303
    %v428 = vpop.f32.mrb[0].mxu0
    %v429 = vadd.f32 0.0, %v428
    %v430 = vpop.f32.mrb[0].mxu0
    %431 = vmatprep.mubr.f32.mxu0 0.0
    %432 = vmatmul.mubr.f32.gmra.mrb[0].mxu0 %v306
    %v433 = vpop.f32.mrb[0].mxu0
    %v434 = vadd.f32 0.0, %v433
    %v435 = vpop.f32.mrb[0].mxu0
    %436 = vmatprep.mubr.f32.mxu0 0.0
    %437 = vmatmul.mubr.f32.gmra.mrb[0].mxu0 %v309
    %v438 = vpop.f32.mrb[0].mxu0
    %v439 = vadd.f32 0.0, %v438
    %v440 = vpop.f32.mrb[0].mxu0
    %441 = vmatprep.mubr.f32.mxu0 0.0
    %442 = vmatmul.mubr.f32.gmra.mrb[0].mxu0 %v312
    %v443 = vpop.f32.mrb[0].mxu0
    %v444 = vadd.f32 0.0, %v443
    %v445 = vpop.f32.mrb[0].mxu0
    %446 = vmatprep.mubr.f32.mxu0 0.0
    %447 = vmatmul.mubr.f32.gmra.mrb[0].mxu0 %v315
    %v448 = vpop.f32.mrb[0].mxu0
    %v449 = vadd.f32 0.0, %v448
    %v450 = vpop.f32.mrb[0].mxu0
    %451 = vmatprep.mubr.f32.mxu0 0.0
    %452 = vmatmul.mubr.f32.gmra.mrb[0].mxu0 %v318
    %v453 = vpop.f32.mrb[0].mxu0
    %v454 = vadd.f32 0.0, %v453
    %v455 = vpop.f32.mrb[0].mxu0
    %456 = vmatprep.mubr.f32.mxu0 0.0
    %457 = vmatmul.mubr.f32.gmra.mrb[0].mxu0 %v321
    %v458 = vpop.f32.mrb[0].mxu0
    %v459 = vadd.f32 0.0, %v458
    %v460 = vpop.f32.mrb[0].mxu0
    %461 = vmatprep.mubr.f32.mxu0 0.0
    %462 = vmatmul.mubr.f32.gmra.mrb[0].mxu0 %v324
    %v463 = vpop.f32.mrb[0].mxu0
    %v464 = vadd.f32 0.0, %v463
    %v465 = vpop.f32.mrb[0].mxu0
    %466 = vmatprep.mubr.f32.mxu0 0.0
    %467 = vmatmul.mubr.f32.gmra.mrb[0].mxu0 %v327
    %v468 = vpop.f32.mrb[0].mxu0
    %v469 = vadd.f32 0.0, %v468
    %v470 = vpop.f32.mrb[0].mxu0
    %471 = vmatprep.mubr.f32.mxu0 0.0
    %472 = vmatmul.mubr.f32.gmra.mrb[0].mxu0 %v330
    %v473 = vpop.f32.mrb[0].mxu0
    %v474 = vadd.f32 0.0, %v473
    %v475 = vpop.f32.mrb[0].mxu0
    %476 = vdwg.mxu0
    %v477 = vld [vmem:[%s4] sm:$0xff]
    %v478 = vld [vmem:[%s4 + $0x8] sm:$0xff]
    %479 = vmatprep.subr.mxu0 0.0
    %480 = vmatpush1.msra.mxu0 %v477
    %481 = vmatprep.subr.mxu0 0.0
    %482 = vmatpush1.msra.mxu0 %v478
    %483 = vmatprep.subr.mxu0 0.0
    %484 = vmatpush1.msra.mxu0 0.0
    %485 = vmatprep.subr.mxu0 0.0
    %486 = vmatpush1.msra.mxu0 0.0
    %487 = vmatprep.subr.mxu0 0.0
    %488 = vmatpush1.msra.mxu0 0.0
    %489 = vmatprep.subr.mxu0 0.0
    %490 = vmatpush1.msra.mxu0 0.0
    %491 = vmatprep.subr.mxu0 0.0
    %492 = vmatpush1.msra.mxu0 0.0
    %493 = vmatprep.subr.mxu0 0.0
    %494 = vmatpush1.msra.mxu0 0.0
    %495 = vmatprep.subr.mxu0 0.0
    %496 = vmatpush1.msra.mxu0 0.0
    %497 = vmatprep.subr.mxu0 0.0
    %498 = vmatpush1.msra.mxu0 0.0
    %499 = vmatprep.subr.mxu0 0.0
    %500 = vmatpush1.msra.mxu0 0.0
    %501 = vmatprep.subr.mxu0 0.0
    %502 = vmatpush1.msra.mxu0 0.0
    %503 = vmatprep.subr.mxu0 0.0
    %504 = vmatpush1.msra.mxu0 0.0
    %505 = vmatprep.subr.mxu0 0.0
    %506 = vmatpush1.msra.mxu0 0.0
    %507 = vmatprep.subr.mxu0 0.0
    %508 = vmatpush1.msra.mxu0 0.0
    %509 = vmatprep.subr.mxu0 0.0
    %510 = vmatpush1.msra.mxu0 0.0
    %511 = vmatprep.subr.mxu0 0.0
    %512 = vmatpush1.msra.mxu0 0.0
    %513 = vmatprep.subr.mxu0 0.0
    %514 = vmatpush1.msra.mxu0 0.0
    %515 = vmatprep.subr.mxu0 0.0
    %516 = vmatpush1.msra.mxu0 0.0
    %517 = vmatprep.subr.mxu0 0.0
    %518 = vmatpush1.msra.mxu0 0.0
    %519 = vmatprep.subr.mxu0 0.0
    %520 = vmatpush1.msra.mxu0 0.0
    %521 = vmatprep.subr.mxu0 0.0
    %522 = vmatpush1.msra.mxu0 0.0
    %523 = vmatprep.subr.mxu0 0.0
    %524 = vmatpush1.msra.mxu0 0.0
    %525 = vmatprep.subr.mxu0 0.0
    %526 = vmatpush1.msra.mxu0 0.0
    %527 = vmatprep.subr.mxu0 0.0
    %528 = vmatpush1.msra.mxu0 0.0
    %529 = vmatprep.subr.mxu0 0.0
    %530 = vmatpush1.msra.mxu0 0.0
    %531 = vmatprep.subr.mxu0 0.0
    %532 = vmatpush1.msra.mxu0 0.0
    %533 = vmatprep.subr.mxu0 0.0
    %534 = vmatpush1.msra.mxu0 0.0
    %535 = vmatprep.subr.mxu0 0.0
    %536 = vmatpush1.msra.mxu0 0.0
    %537 = vmatprep.subr.mxu0 0.0
    %538 = vmatpush1.msra.mxu0 0.0
    %539 = vmatprep.subr.mxu0 0.0
    %540 = vmatpush1.msra.mxu0 0.0
    %541 = vmatprep.subr.mxu0 0.0
    %542 = vmatpush1.msra.mxu0 0.0
    %543 = vmatprep.mubr.f32.mxu0 0.0
    %544 = vmatmul.mubr.f32.gmra.mrb[0].mxu0 %v285
    %v545 = vpop.f32.mrb[0].mxu0
    %v546 = vadd.f32 0.0, %v545
    %v547 = vpop.f32.mrb[0].mxu0
    %548 = vmatprep.mubr.f32.mxu0 0.0
    %549 = vmatmul.mubr.f32.gmra.mrb[0].mxu0 %v288
    %v550 = vpop.f32.mrb[0].mxu0
    %v551 = vadd.f32 0.0, %v550
    %v552 = vpop.f32.mrb[0].mxu0
    %553 = vmatprep.mubr.f32.mxu0 0.0
    %554 = vmatmul.mubr.f32.gmra.mrb[0].mxu0 %v291
    %v555 = vpop.f32.mrb[0].mxu0
    %v556 = vadd.f32 0.0, %v555
    %v557 = vpop.f32.mrb[0].mxu0
    %558 = vmatprep.mubr.f32.mxu0 0.0
    %559 = vmatmul.mubr.f32.gmra.mrb[0].mxu0 %v294
    %v560 = vpop.f32.mrb[0].mxu0
    %v561 = vadd.f32 0.0, %v560
    %v562 = vpop.f32.mrb[0].mxu0
    %563 = vmatprep.mubr.f32.mxu0 0.0
    %564 = vmatmul.mubr.f32.gmra.mrb[0].mxu0 %v297
    %v565 = vpop.f32.mrb[0].mxu0
    %v566 = vadd.f32 0.0, %v565
    %v567 = vpop.f32.mrb[0].mxu0
    %568 = vmatprep.mubr.f32.mxu0 0.0
    %569 = vmatmul.mubr.f32.gmra.mrb[0].mxu0 %v300
    %v570 = vpop.f32.mrb[0].mxu0
    %v571 = vadd.f32 0.0, %v570
    %v572 = vpop.f32.mrb[0].mxu0
    %573 = vmatprep.mubr.f32.mxu0 0.0
    %574 = vmatmul.mubr.f32.gmra.mrb[0].mxu0 %v303
    %v575 = vpop.f32.mrb[0].mxu0
    %v576 = vadd.f32 0.0, %v575
    %v577 = vpop.f32.mrb[0].mxu0
    %578 = vmatprep.mubr.f32.mxu0 0.0
    %579 = vmatmul.mubr.f32.gmra.mrb[0].mxu0 %v306
    %v580 = vpop.f32.mrb[0].mxu0
    %v581 = vadd.f32 0.0, %v580
    %v582 = vpop.f32.mrb[0].mxu0
    %583 = vmatprep.mubr.f32.mxu0 0.0
    %584 = vmatmul.mubr.f32.gmra.mrb[0].mxu0 %v309
    %v585 = vpop.f32.mrb[0].mxu0
    %v586 = vadd.f32 0.0, %v585
    %v587 = vpop.f32.mrb[0].mxu0
    %588 = vmatprep.mubr.f32.mxu0 0.0
    %589 = vmatmul.mubr.f32.gmra.mrb[0].mxu0 %v312
    %v590 = vpop.f32.mrb[0].mxu0
    %v591 = vadd.f32 0.0, %v590
    %v592 = vpop.f32.mrb[0].mxu0
    %593 = vmatprep.mubr.f32.mxu0 0.0
    %594 = vmatmul.mubr.f32.gmra.mrb[0].mxu0 %v315
    %v595 = vpop.f32.mrb[0].mxu0
    %v596 = vadd.f32 0.0, %v595
    %v597 = vpop.f32.mrb[0].mxu0
    %598 = vmatprep.mubr.f32.mxu0 0.0
    %599 = vmatmul.mubr.f32.gmra.mrb[0].mxu0 %v318
    %v600 = vpop.f32.mrb[0].mxu0
    %v601 = vadd.f32 0.0, %v600
    %v602 = vpop.f32.mrb[0].mxu0
    %603 = vmatprep.mubr.f32.mxu0 0.0
    %604 = vmatmul.mubr.f32.gmra.mrb[0].mxu0 %v321
    %v605 = vpop.f32.mrb[0].mxu0
    %v606 = vadd.f32 0.0, %v605
    %v607 = vpop.f32.mrb[0].mxu0
    %608 = vmatprep.mubr.f32.mxu0 0.0
    %609 = vmatmul.mubr.f32.gmra.mrb[0].mxu0 %v324
    %v610 = vpop.f32.mrb[0].mxu0
    %v611 = vadd.f32 0.0, %v610
    %v612 = vpop.f32.mrb[0].mxu0
    %613 = vmatprep.mubr.f32.mxu0 0.0
    %614 = vmatmul.mubr.f32.gmra.mrb[0].mxu0 %v327
    %v615 = vpop.f32.mrb[0].mxu0
    %v616 = vadd.f32 0.0, %v615
    %v617 = vpop.f32.mrb[0].mxu0
    %618 = vmatprep.mubr.f32.mxu0 0.0
    %619 = vmatmul.mubr.f32.gmra.mrb[0].mxu0 %v330
    %v620 = vpop.f32.mrb[0].mxu0
    %v621 = vadd.f32 0.0, %v620
    %v622 = vpop.f32.mrb[0].mxu0
    %623 = vdwg.mxu0
    %v624 = vmul.f32 %v187, %v399
    %v625 = vmul.f32 %v192, %v404
    %v626 = vmul.f32 %v197, %v409
    %v627 = vmul.f32 %v202, %v414
    %v628 = vmul.f32 %v207, %v419
    %v629 = vmul.f32 %v212, %v424
    %v630 = vmul.f32 %v217, %v429
    %v631 = vmul.f32 %v222, %v434
    %v632 = vmul.f32 %v227, %v439
    %v633 = vmul.f32 %v232, %v444
    %v634 = vmul.f32 %v237, %v449
    %v635 = vmul.f32 %v242, %v454
    %v636 = vmul.f32 %v247, %v459
    %v637 = vmul.f32 %v252, %v464
    %v638 = vmul.f32 %v257, %v469
    %v639 = vmul.f32 %v262, %v474
    %v640 = vld [vmem:[%s5] sm:$0xff]
    %v641 = vld [vmem:[%s5 + $0x8] sm:$0xff]
    %v643 = vsel %vm283, %v624, 0
    %v646 = vsel %vm283, %v625, 0
    %v649 = vsel %vm283, %v626, 0
    %v652 = vsel %vm283, %v627, 0
    %v655 = vsel %vm283, %v628, 0
    %v658 = vsel %vm283, %v629, 0
    %v661 = vsel %vm283, %v630, 0
    %v664 = vsel %vm283, %v631, 0
    %v667 = vsel %vm283, %v632, 0
    %v670 = vsel %vm283, %v633, 0
    %v673 = vsel %vm283, %v634, 0
    %v676 = vsel %vm283, %v635, 0
    %v679 = vsel %vm283, %v636, 0
    %v682 = vsel %vm283, %v637, 0
    %v685 = vsel %vm283, %v638, 0
    %v688 = vsel %vm283, %v639, 0
    %690 = vmatprep.subr.mxu0 0.0
    %691 = vmatpush1.msra.mxu0 %v640
    %692 = vmatprep.subr.mxu0 0.0
    %693 = vmatpush1.msra.mxu0 %v641
    %694 = vmatprep.subr.mxu0 0.0
    %695 = vmatpush1.msra.mxu0 0.0
    %696 = vmatprep.subr.mxu0 0.0
    %697 = vmatpush1.msra.mxu0 0.0
    %698 = vmatprep.subr.mxu0 0.0
    %699 = vmatpush1.msra.mxu0 0.0
    %700 = vmatprep.subr.mxu0 0.0
    %701 = vmatpush1.msra.mxu0 0.0
    %702 = vmatprep.subr.mxu0 0.0
    %703 = vmatpush1.msra.mxu0 0.0
    %704 = vmatprep.subr.mxu0 0.0
    %705 = vmatpush1.msra.mxu0 0.0
    %706 = vmatprep.subr.mxu0 0.0
    %707 = vmatpush1.msra.mxu0 0.0
    %708 = vmatprep.subr.mxu0 0.0
    %709 = vmatpush1.msra.mxu0 0.0
    %710 = vmatprep.subr.mxu0 0.0
    %711 = vmatpush1.msra.mxu0 0.0
    %712 = vmatprep.subr.mxu0 0.0
    %713 = vmatpush1.msra.mxu0 0.0
    %714 = vmatprep.subr.mxu0 0.0
    %715 = vmatpush1.msra.mxu0 0.0
    %716 = vmatprep.subr.mxu0 0.0
    %717 = vmatpush1.msra.mxu0 0.0
    %718 = vmatprep.subr.mxu0 0.0
    %719 = vmatpush1.msra.mxu0 0.0
    %720 = vmatprep.subr.mxu0 0.0
    %721 = vmatpush1.msra.mxu0 0.0
    %722 = vmatprep.subr.mxu0 0.0
    %723 = vmatpush1.msra.mxu0 0.0
    %724 = vmatprep.subr.mxu0 0.0
    %725 = vmatpush1.msra.mxu0 0.0
    %726 = vmatprep.subr.mxu0 0.0
    %727 = vmatpush1.msra.mxu0 0.0
    %728 = vmatprep.subr.mxu0 0.0
    %729 = vmatpush1.msra.mxu0 0.0
    %730 = vmatprep.subr.mxu0 0.0
    %731 = vmatpush1.msra.mxu0 0.0
    %732 = vmatprep.subr.mxu0 0.0
    %733 = vmatpush1.msra.mxu0 0.0
    %734 = vmatprep.subr.mxu0 0.0
    %735 = vmatpush1.msra.mxu0 0.0
    %736 = vmatprep.subr.mxu0 0.0
    %737 = vmatpush1.msra.mxu0 0.0
    %738 = vmatprep.subr.mxu0 0.0
    %739 = vmatpush1.msra.mxu0 0.0
    %740 = vmatprep.subr.mxu0 0.0
    %741 = vmatpush1.msra.mxu0 0.0
    %742 = vmatprep.subr.mxu0 0.0
    %743 = vmatpush1.msra.mxu0 0.0
    %744 = vmatprep.subr.mxu0 0.0
    %745 = vmatpush1.msra.mxu0 0.0
    %746 = vmatprep.subr.mxu0 0.0
    %747 = vmatpush1.msra.mxu0 0.0
    %748 = vmatprep.subr.mxu0 0.0
    %749 = vmatpush1.msra.mxu0 0.0
    %750 = vmatprep.subr.mxu0 0.0
    %751 = vmatpush1.msra.mxu0 0.0
    %752 = vmatprep.subr.mxu0 0.0
    %753 = vmatpush1.msra.mxu0 0.0
    %754 = vmatprep.mubr.f32.mxu0 0.0
    %755 = vmatmul.mubr.f32.gmra.mrb[0].mxu0 %v643
    %v756 = vpop.f32.mrb[0].mxu0
    %v757 = vadd.f32 0.0, %v756
    %v758 = vpop.f32.mrb[0].mxu0
    %759 = vmatprep.mubr.f32.mxu0 0.0
    %760 = vmatmul.mubr.f32.gmra.mrb[0].mxu0 %v646
    %v761 = vpop.f32.mrb[0].mxu0
    %v762 = vadd.f32 0.0, %v761
    %v763 = vpop.f32.mrb[0].mxu0
    %764 = vmatprep.mubr.f32.mxu0 0.0
    %765 = vmatmul.mubr.f32.gmra.mrb[0].mxu0 %v649
    %v766 = vpop.f32.mrb[0].mxu0
    %v767 = vadd.f32 0.0, %v766
    %v768 = vpop.f32.mrb[0].mxu0
    %769 = vmatprep.mubr.f32.mxu0 0.0
    %770 = vmatmul.mubr.f32.gmra.mrb[0].mxu0 %v652
    %v771 = vpop.f32.mrb[0].mxu0
    %v772 = vadd.f32 0.0, %v771
    %v773 = vpop.f32.mrb[0].mxu0
    %774 = vmatprep.mubr.f32.mxu0 0.0
    %775 = vmatmul.mubr.f32.gmra.mrb[0].mxu0 %v655
    %v776 = vpop.f32.mrb[0].mxu0
    %v777 = vadd.f32 0.0, %v776
    %v778 = vpop.f32.mrb[0].mxu0
    %779 = vmatprep.mubr.f32.mxu0 0.0
    %780 = vmatmul.mubr.f32.gmra.mrb[0].mxu0 %v658
    %v781 = vpop.f32.mrb[0].mxu0
    %v782 = vadd.f32 0.0, %v781
    %v783 = vpop.f32.mrb[0].mxu0
    %784 = vmatprep.mubr.f32.mxu0 0.0
    %785 = vmatmul.mubr.f32.gmra.mrb[0].mxu0 %v661
    %v786 = vpop.f32.mrb[0].mxu0
    %v787 = vadd.f32 0.0, %v786
    %v788 = vpop.f32.mrb[0].mxu0
    %789 = vmatprep.mubr.f32.mxu0 0.0
    %790 = vmatmul.mubr.f32.gmra.mrb[0].mxu0 %v664
    %v791 = vpop.f32.mrb[0].mxu0
    %v792 = vadd.f32 0.0, %v791
    %v793 = vpop.f32.mrb[0].mxu0
    %794 = vmatprep.mubr.f32.mxu0 0.0
    %795 = vmatmul.mubr.f32.gmra.mrb[0].mxu0 %v667
    %v796 = vpop.f32.mrb[0].mxu0
    %v797 = vadd.f32 0.0, %v796
    %v798 = vpop.f32.mrb[0].mxu0
    %799 = vmatprep.mubr.f32.mxu0 0.0
    %800 = vmatmul.mubr.f32.gmra.mrb[0].mxu0 %v670
    %v801 = vpop.f32.mrb[0].mxu0
    %v802 = vadd.f32 0.0, %v801
    %v803 = vpop.f32.mrb[0].mxu0
    %804 = vmatprep.mubr.f32.mxu0 0.0
    %805 = vmatmul.mubr.f32.gmra.mrb[0].mxu0 %v673
    %v806 = vpop.f32.mrb[0].mxu0
    %v807 = vadd.f32 0.0, %v806
    %v808 = vpop.f32.mrb[0].mxu0
    %809 = vmatprep.mubr.f32.mxu0 0.0
    %810 = vmatmul.mubr.f32.gmra.mrb[0].mxu0 %v676
    %v811 = vpop.f32.mrb[0].mxu0
    %v812 = vadd.f32 0.0, %v811
    %v813 = vpop.f32.mrb[0].mxu0
    %814 = vmatprep.mubr.f32.mxu0 0.0
    %815 = vmatmul.mubr.f32.gmra.mrb[0].mxu0 %v679
    %v816 = vpop.f32.mrb[0].mxu0
    %v817 = vadd.f32 0.0, %v816
    %v818 = vpop.f32.mrb[0].mxu0
    %819 = vmatprep.mubr.f32.mxu0 0.0
    %820 = vmatmul.mubr.f32.gmra.mrb[0].mxu0 %v682
    %v821 = vpop.f32.mrb[0].mxu0
    %v822 = vadd.f32 0.0, %v821
    %v823 = vpop.f32.mrb[0].mxu0
    %824 = vmatprep.mubr.f32.mxu0 0.0
    %825 = vmatmul.mubr.f32.gmra.mrb[0].mxu0 %v685
    %v826 = vpop.f32.mrb[0].mxu0
    %v827 = vadd.f32 0.0, %v826
    %v828 = vpop.f32.mrb[0].mxu0
    %829 = vmatprep.mubr.f32.mxu0 0.0
    %830 = vmatmul.mubr.f32.gmra.mrb[0].mxu0 %v688
    %v831 = vpop.f32.mrb[0].mxu0
    %v832 = vadd.f32 0.0, %v831
    %v833 = vpop.f32.mrb[0].mxu0
    %834 = vdwg.mxu0
    %vm835 = vcmask 64512
    %v836 = vsel %vm835, %v757, -inf
    %v837 = vsel %vm835, %v762, -inf
    %v838 = vsel %vm835, %v767, -inf
    %v839 = vmax.f32 %v836, %v838
    %v840 = vsel %vm835, %v772, -inf
    %v841 = vmax.f32 %v837, %v840
    %v842 = vsel %vm835, %v777, -inf
    %v843 = vmax.f32 %v839, %v842
    %v844 = vsel %vm835, %v782, -inf
    %v845 = vmax.f32 %v841, %v844
    %v846 = vsel %vm835, %v787, -inf
    %v847 = vmax.f32 %v843, %v846
    %v848 = vsel %vm835, %v792, -inf
    %v849 = vmax.f32 %v845, %v848
    %v850 = vmax.f32 %v847, %v849
    %v851 = vsel %vm835, %v797, -inf
    %v852 = vsel %vm835, %v802, -inf
    %v853 = vsel %vm835, %v807, -inf
    %v854 = vmax.f32 %v851, %v853
    %v855 = vsel %vm835, %v812, -inf
    %v856 = vmax.f32 %v852, %v855
    %v857 = vsel %vm835, %v817, -inf
    %v858 = vmax.f32 %v854, %v857
    %v859 = vsel %vm835, %v822, -inf
    %v860 = vmax.f32 %v856, %v859
    %v861 = vsel %vm835, %v827, -inf
    %v862 = vmax.f32 %v858, %v861
    %v863 = vsel %vm835, %v832, -inf
    %v864 = vmax.f32 %v860, %v863
    %v865 = vmax.f32 %v862, %v864
    %v866 = vsub.f32 %v757, %v850
    %v867 = vsub.f32 %v762, %v850
    %v868 = vsub.f32 %v767, %v850
    %v869 = vsub.f32 %v772, %v850
    %v870 = vsub.f32 %v777, %v850
    %v871 = vsub.f32 %v782, %v850
    %v872 = vsub.f32 %v787, %v850
    %v873 = vsub.f32 %v792, %v850
    %v874 = vsub.f32 %v797, %v865
    %v875 = vsub.f32 %v802, %v865
    %v876 = vsub.f32 %v807, %v865
    %v877 = vsub.f32 %v812, %v865
    %v878 = vsub.f32 %v817, %v865
    %v879 = vsub.f32 %v822, %v865
    %v880 = vsub.f32 %v827, %v865
    %v881 = vsub.f32 %v832, %v865
    %v882 = vmul.f32 %v866, 1.442695
    %v883 = vpow.pop %v882
    %v884 = vmul.f32 %v867, 1.442695
    %v885 = vpow.pop %v884
    %v886 = vmul.f32 %v868, 1.442695
    %v887 = vpow.pop %v886
    %v888 = vmul.f32 %v869, 1.442695
    %v889 = vpow.pop %v888
    %v890 = vmul.f32 %v870, 1.442695
    %v891 = vpow.pop %v890
    %v892 = vmul.f32 %v871, 1.442695
    %v893 = vpow.pop %v892
    %v894 = vmul.f32 %v872, 1.442695
    %v895 = vpow.pop %v894
    %v896 = vmul.f32 %v873, 1.442695
    %v897 = vpow.pop %v896
    %v898 = vmul.f32 %v874, 1.442695
    %v899 = vpow.pop %v898
    %v900 = vmul.f32 %v875, 1.442695
    %v901 = vpow.pop %v900
    %v902 = vmul.f32 %v876, 1.442695
    %v903 = vpow.pop %v902
    %v904 = vmul.f32 %v877, 1.442695
    %v905 = vpow.pop %v904
    %v906 = vmul.f32 %v878, 1.442695
    %v907 = vpow.pop %v906
    %v908 = vmul.f32 %v879, 1.442695
    %v909 = vpow.pop %v908
    %v910 = vmul.f32 %v880, 1.442695
    %v911 = vpow.pop %v910
    %v912 = vmul.f32 %v881, 1.442695
    %v913 = vpow.pop %v912
    %v914 = vsel %vm835, %v883, 0.0
    %v915 = vsel %vm835, %v885, 0.0
    %v916 = vadd.f32 %v914, %v915
    %v917 = vsel %vm835, %v887, 0.0
    %v918 = vadd.f32 %v916, %v917
    %v919 = vsel %vm835, %v889, 0.0
    %v920 = vadd.f32 %v918, %v919
    %v921 = vsel %vm835, %v891, 0.0
    %v922 = vadd.f32 %v920, %v921
    %v923 = vsel %vm835, %v893, 0.0
    %v924 = vadd.f32 %v922, %v923
    %v925 = vsel %vm835, %v895, 0.0
    %v926 = vadd.f32 %v924, %v925
    %v927 = vsel %vm835, %v897, 0.0
    %v928 = vadd.f32 %v926, %v927
    %v929 = vsel %vm835, %v899, 0.0
    %v930 = vsel %vm835, %v901, 0.0
    %v931 = vadd.f32 %v929, %v930
    %v932 = vsel %vm835, %v903, 0.0
    %v933 = vadd.f32 %v931, %v932
    %v934 = vsel %vm835, %v905, 0.0
    %v935 = vadd.f32 %v933, %v934
    %v936 = vsel %vm835, %v907, 0.0
    %v937 = vadd.f32 %v935, %v936
    %v938 = vsel %vm835, %v909, 0.0
    %v939 = vadd.f32 %v937, %v938
    %v940 = vsel %vm835, %v911, 0.0
    %v941 = vadd.f32 %v939, %v940
    %v942 = vsel %vm835, %v913, 0.0
    %v943 = vadd.f32 %v941, %v942
    %v944 = vrcp.pop %v928
    %v945 = vrcp.pop %v943
    %v946 = vmul.f32 %v883, %v944
    %v947 = vmul.f32 %v885, %v944
    %v948 = vmul.f32 %v887, %v944
    %v949 = vmul.f32 %v889, %v944
    %v950 = vmul.f32 %v891, %v944
    %v951 = vmul.f32 %v893, %v944
    %v952 = vmul.f32 %v895, %v944
    %v953 = vmul.f32 %v897, %v944
    %v954 = vmul.f32 %v899, %v945
    %v955 = vmul.f32 %v901, %v945
    %v956 = vmul.f32 %v903, %v945
    %v957 = vmul.f32 %v905, %v945
    %v958 = vmul.f32 %v907, %v945
    %v959 = vmul.f32 %v909, %v945
    %v960 = vmul.f32 %v911, %v945
    %v961 = vmul.f32 %v913, %v945
    %v962 = vsub.f32 1.0, %v946
    %v963 = vsub.f32 1.0, %v947
    %v964 = vsub.f32 1.0, %v948
    %v965 = vsub.f32 1.0, %v949
    %v966 = vsub.f32 1.0, %v950
    %v967 = vsub.f32 1.0, %v951
    %v968 = vsub.f32 1.0, %v952
    %v969 = vsub.f32 1.0, %v953
    %v970 = vsub.f32 1.0, %v954
    %v971 = vsub.f32 1.0, %v955
    %v972 = vsub.f32 1.0, %v956
    %v973 = vsub.f32 1.0, %v957
    %v974 = vsub.f32 1.0, %v958
    %v975 = vsub.f32 1.0, %v959
    %v976 = vsub.f32 1.0, %v960
    %v977 = vsub.f32 1.0, %v961
    %v978 = vsel %vm835, %v962, -inf
    %v979 = vsel %vm835, %v963, -inf
    %v980 = vsel %vm835, %v964, -inf
    %v981 = vmax.f32 %v978, %v980
    %v982 = vsel %vm835, %v965, -inf
    %v983 = vmax.f32 %v979, %v982
    %v984 = vsel %vm835, %v966, -inf
    %v985 = vmax.f32 %v981, %v984
    %v986 = vsel %vm835, %v967, -inf
    %v987 = vmax.f32 %v983, %v986
    %v988 = vsel %vm835, %v968, -inf
    %v989 = vmax.f32 %v985, %v988
    %v990 = vsel %vm835, %v969, -inf
    %v991 = vmax.f32 %v987, %v990
    %v992 = vmax.f32 %v989, %v991
    %v993 = vsel %vm835, %v970, -inf
    %v994 = vsel %vm835, %v971, -inf
    %v995 = vsel %vm835, %v972, -inf
    %v996 = vmax.f32 %v993, %v995
    %v997 = vsel %vm835, %v973, -inf
    %v998 = vmax.f32 %v994, %v997
    %v999 = vsel %vm835, %v974, -inf
    %v1000 = vmax.f32 %v996, %v999
    %v1001 = vsel %vm835, %v975, -inf
    %v1002 = vmax.f32 %v998, %v1001
    %v1003 = vsel %vm835, %v976, -inf
    %v1004 = vmax.f32 %v1000, %v1003
    %v1005 = vsel %vm835, %v977, -inf
    %v1006 = vmax.f32 %v1002, %v1005
    %v1007 = vmax.f32 %v1004, %v1006
    %v1008 = vsub.f32 %v962, %v992
    %v1009 = vsub.f32 %v963, %v992
    %v1010 = vsub.f32 %v964, %v992
    %v1011 = vsub.f32 %v965, %v992
    %v1012 = vsub.f32 %v966, %v992
    %v1013 = vsub.f32 %v967, %v992
    %v1014 = vsub.f32 %v968, %v992
    %v1015 = vsub.f32 %v969, %v992
    %v1016 = vsub.f32 %v970, %v1007
    %v1017 = vsub.f32 %v971, %v1007
    %v1018 = vsub.f32 %v972, %v1007
    %v1019 = vsub.f32 %v973, %v1007
    %v1020 = vsub.f32 %v974, %v1007
    %v1021 = vsub.f32 %v975, %v1007
    %v1022 = vsub.f32 %v976, %v1007
    %v1023 = vsub.f32 %v977, %v1007
    %v1024 = vmul.f32 %v1008, 1.442695
    %v1025 = vpow.pop %v1024
    %v1026 = vmul.f32 %v1009, 1.442695
    %v1027 = vpow.pop %v1026
    %v1028 = vmul.f32 %v1010, 1.442695
    %v1029 = vpow.pop %v1028
    %v1030 = vmul.f32 %v1011, 1.442695
    %v1031 = vpow.pop %v1030
    %v1032 = vmul.f32 %v1012, 1.442695
    %v1033 = vpow.pop %v1032
    %v1034 = vmul.f32 %v1013, 1.442695
    %v1035 = vpow.pop %v1034
    %v1036 = vmul.f32 %v1014, 1.442695
    %v1037 = vpow.pop %v1036
    %v1038 = vmul.f32 %v1015, 1.442695
    %v1039 = vpow.pop %v1038
    %v1040 = vmul.f32 %v1016, 1.442695
    %v1041 = vpow.pop %v1040
    %v1042 = vmul.f32 %v1017, 1.442695
    %v1043 = vpow.pop %v1042
    %v1044 = vmul.f32 %v1018, 1.442695
    %v1045 = vpow.pop %v1044
    %v1046 = vmul.f32 %v1019, 1.442695
    %v1047 = vpow.pop %v1046
    %v1048 = vmul.f32 %v1020, 1.442695
    %v1049 = vpow.pop %v1048
    %v1050 = vmul.f32 %v1021, 1.442695
    %v1051 = vpow.pop %v1050
    %v1052 = vmul.f32 %v1022, 1.442695
    %v1053 = vpow.pop %v1052
    %v1054 = vmul.f32 %v1023, 1.442695
    %v1055 = vpow.pop %v1054
    %v1056 = vsel %vm835, %v1025, 0.0
    %v1057 = vsel %vm835, %v1027, 0.0
    %v1058 = vadd.f32 %v1056, %v1057
    %v1059 = vsel %vm835, %v1029, 0.0
    %v1060 = vadd.f32 %v1058, %v1059
    %v1061 = vsel %vm835, %v1031, 0.0
    %v1062 = vadd.f32 %v1060, %v1061
    %v1063 = vsel %vm835, %v1033, 0.0
    %v1064 = vadd.f32 %v1062, %v1063
    %v1065 = vsel %vm835, %v1035, 0.0
    %v1066 = vadd.f32 %v1064, %v1065
    %v1067 = vsel %vm835, %v1037, 0.0
    %v1068 = vadd.f32 %v1066, %v1067
    %v1069 = vsel %vm835, %v1039, 0.0
    %v1070 = vadd.f32 %v1068, %v1069
    %v1071 = vsel %vm835, %v1041, 0.0
    %v1072 = vsel %vm835, %v1043, 0.0
    %v1073 = vadd.f32 %v1071, %v1072
    %v1074 = vsel %vm835, %v1045, 0.0
    %v1075 = vadd.f32 %v1073, %v1074
    %v1076 = vsel %vm835, %v1047, 0.0
    %v1077 = vadd.f32 %v1075, %v1076
    %v1078 = vsel %vm835, %v1049, 0.0
    %v1079 = vadd.f32 %v1077, %v1078
    %v1080 = vsel %vm835, %v1051, 0.0
    %v1081 = vadd.f32 %v1079, %v1080
    %v1082 = vsel %vm835, %v1053, 0.0
    %v1083 = vadd.f32 %v1081, %v1082
    %v1084 = vsel %vm835, %v1055, 0.0
    %v1085 = vadd.f32 %v1083, %v1084
    %v1086 = vrcp.pop %v1070
    %v1087 = vrcp.pop %v1085
    %v1088 = vmul.f32 %v1025, %v1086
    %v1089 = vmul.f32 %v1027, %v1086
    %v1090 = vmul.f32 %v1029, %v1086
    %v1091 = vmul.f32 %v1031, %v1086
    %v1092 = vmul.f32 %v1033, %v1086
    %v1093 = vmul.f32 %v1035, %v1086
    %v1094 = vmul.f32 %v1037, %v1086
    %v1095 = vmul.f32 %v1039, %v1086
    %v1096 = vmul.f32 %v1041, %v1087
    %v1097 = vmul.f32 %v1043, %v1087
    %v1098 = vmul.f32 %v1045, %v1087
    %v1099 = vmul.f32 %v1047, %v1087
    %v1100 = vmul.f32 %v1049, %v1087
    %v1101 = vmul.f32 %v1051, %v1087
    %v1102 = vmul.f32 %v1053, %v1087
    %v1103 = vmul.f32 %v1055, %v1087
    %v1104 = vld [vmem:[%s6] sm:$0xff]
    %v1106 = vsel %vm835, %v1088, 0
    %v1109 = vsel %vm835, %v1089, 0
    %v1112 = vsel %vm835, %v1090, 0
    %v1115 = vsel %vm835, %v1091, 0
    %v1118 = vsel %vm835, %v1092, 0
    %v1121 = vsel %vm835, %v1093, 0
    %v1124 = vsel %vm835, %v1094, 0
    %v1127 = vsel %vm835, %v1095, 0
    %v1130 = vsel %vm835, %v1096, 0
    %v1133 = vsel %vm835, %v1097, 0
    %v1136 = vsel %vm835, %v1098, 0
    %v1139 = vsel %vm835, %v1099, 0
    %v1142 = vsel %vm835, %v1100, 0
    %v1145 = vsel %vm835, %v1101, 0
    %v1148 = vsel %vm835, %v1102, 0
    %v1151 = vsel %vm835, %v1103, 0
    %1153 = vmatprep.subr.mxu0 0.0
    %1154 = vmatpush1.msra.mxu0 %v1104
    %1155 = vmatprep.subr.mxu0 0.0
    %1156 = vmatpush1.msra.mxu0 0.0
    %1157 = vmatprep.subr.mxu0 0.0
    %1158 = vmatpush1.msra.mxu0 0.0
    %1159 = vmatprep.subr.mxu0 0.0
    %1160 = vmatpush1.msra.mxu0 0.0
    %1161 = vmatprep.subr.mxu0 0.0
    %1162 = vmatpush1.msra.mxu0 0.0
    %1163 = vmatprep.subr.mxu0 0.0
    %1164 = vmatpush1.msra.mxu0 0.0
    %1165 = vmatprep.subr.mxu0 0.0
    %1166 = vmatpush1.msra.mxu0 0.0
    %1167 = vmatprep.subr.mxu0 0.0
    %1168 = vmatpush1.msra.mxu0 0.0
    %1169 = vmatprep.subr.mxu0 0.0
    %1170 = vmatpush1.msra.mxu0 0.0
    %1171 = vmatprep.subr.mxu0 0.0
    %1172 = vmatpush1.msra.mxu0 0.0
    %1173 = vmatprep.subr.mxu0 0.0
    %1174 = vmatpush1.msra.mxu0 0.0
    %1175 = vmatprep.subr.mxu0 0.0
    %1176 = vmatpush1.msra.mxu0 0.0
    %1177 = vmatprep.subr.mxu0 0.0
    %1178 = vmatpush1.msra.mxu0 0.0
    %1179 = vmatprep.subr.mxu0 0.0
    %1180 = vmatpush1.msra.mxu0 0.0
    %1181 = vmatprep.subr.mxu0 0.0
    %1182 = vmatpush1.msra.mxu0 0.0
    %1183 = vmatprep.subr.mxu0 0.0
    %1184 = vmatpush1.msra.mxu0 0.0
    %1185 = vmatprep.subr.mxu0 0.0
    %1186 = vmatpush1.msra.mxu0 0.0
    %1187 = vmatprep.subr.mxu0 0.0
    %1188 = vmatpush1.msra.mxu0 0.0
    %1189 = vmatprep.subr.mxu0 0.0
    %1190 = vmatpush1.msra.mxu0 0.0
    %1191 = vmatprep.subr.mxu0 0.0
    %1192 = vmatpush1.msra.mxu0 0.0
    %1193 = vmatprep.subr.mxu0 0.0
    %1194 = vmatpush1.msra.mxu0 0.0
    %1195 = vmatprep.subr.mxu0 0.0
    %1196 = vmatpush1.msra.mxu0 0.0
    %1197 = vmatprep.subr.mxu0 0.0
    %1198 = vmatpush1.msra.mxu0 0.0
    %1199 = vmatprep.subr.mxu0 0.0
    %1200 = vmatpush1.msra.mxu0 0.0
    %1201 = vmatprep.subr.mxu0 0.0
    %1202 = vmatpush1.msra.mxu0 0.0
    %1203 = vmatprep.subr.mxu0 0.0
    %1204 = vmatpush1.msra.mxu0 0.0
    %1205 = vmatprep.subr.mxu0 0.0
    %1206 = vmatpush1.msra.mxu0 0.0
    %1207 = vmatprep.subr.mxu0 0.0
    %1208 = vmatpush1.msra.mxu0 0.0
    %1209 = vmatprep.subr.mxu0 0.0
    %1210 = vmatpush1.msra.mxu0 0.0
    %1211 = vmatprep.subr.mxu0 0.0
    %1212 = vmatpush1.msra.mxu0 0.0
    %1213 = vmatprep.subr.mxu0 0.0
    %1214 = vmatpush1.msra.mxu0 0.0
    %1215 = vmatprep.subr.mxu0 0.0
    %1216 = vmatpush1.msra.mxu0 0.0
    %1217 = vmatprep.mubr.f32.mxu0 0.0
    %1218 = vmatmul.mubr.f32.gmra.mrb[0].mxu0 %v1106
    %v1219 = vpop.f32.mrb[0].mxu0
    %v1220 = vadd.f32 0.0, %v1219
    %v1221 = vpop.f32.mrb[0].mxu0
    %1222 = vmatprep.mubr.f32.mxu0 0.0
    %1223 = vmatmul.mubr.f32.gmra.mrb[0].mxu0 %v1109
    %v1224 = vpop.f32.mrb[0].mxu0
    %v1225 = vadd.f32 0.0, %v1224
    %v1226 = vpop.f32.mrb[0].mxu0
    %1227 = vmatprep.mubr.f32.mxu0 0.0
    %1228 = vmatmul.mubr.f32.gmra.mrb[0].mxu0 %v1112
    %v1229 = vpop.f32.mrb[0].mxu0
    %v1230 = vadd.f32 0.0, %v1229
    %v1231 = vpop.f32.mrb[0].mxu0
    %1232 = vmatprep.mubr.f32.mxu0 0.0
    %1233 = vmatmul.mubr.f32.gmra.mrb[0].mxu0 %v1115
    %v1234 = vpop.f32.mrb[0].mxu0
    %v1235 = vadd.f32 0.0, %v1234
    %v1236 = vpop.f32.mrb[0].mxu0
    %1237 = vmatprep.mubr.f32.mxu0 0.0
    %1238 = vmatmul.mubr.f32.gmra.mrb[0].mxu0 %v1118
    %v1239 = vpop.f32.mrb[0].mxu0
    %v1240 = vadd.f32 0.0, %v1239
    %v1241 = vpop.f32.mrb[0].mxu0
    %1242 = vmatprep.mubr.f32.mxu0 0.0
    %1243 = vmatmul.mubr.f32.gmra.mrb[0].mxu0 %v1121
    %v1244 = vpop.f32.mrb[0].mxu0
    %v1245 = vadd.f32 0.0, %v1244
    %v1246 = vpop.f32.mrb[0].mxu0
    %1247 = vmatprep.mubr.f32.mxu0 0.0
    %1248 = vmatmul.mubr.f32.gmra.mrb[0].mxu0 %v1124
    %v1249 = vpop.f32.mrb[0].mxu0
    %v1250 = vadd.f32 0.0, %v1249
    %v1251 = vpop.f32.mrb[0].mxu0
    %1252 = vmatprep.mubr.f32.mxu0 0.0
    %1253 = vmatmul.mubr.f32.gmra.mrb[0].mxu0 %v1127
    %v1254 = vpop.f32.mrb[0].mxu0
    %v1255 = vadd.f32 0.0, %v1254
    %v1256 = vpop.f32.mrb[0].mxu0
    %1257 = vmatprep.mubr.f32.mxu0 0.0
    %1258 = vmatmul.mubr.f32.gmra.mrb[0].mxu0 %v1130
    %v1259 = vpop.f32.mrb[0].mxu0
    %v1260 = vadd.f32 0.0, %v1259
    %v1261 = vpop.f32.mrb[0].mxu0
    %1262 = vmatprep.mubr.f32.mxu0 0.0
    %1263 = vmatmul.mubr.f32.gmra.mrb[0].mxu0 %v1133
    %v1264 = vpop.f32.mrb[0].mxu0
    %v1265 = vadd.f32 0.0, %v1264
    %v1266 = vpop.f32.mrb[0].mxu0
    %1267 = vmatprep.mubr.f32.mxu0 0.0
    %1268 = vmatmul.mubr.f32.gmra.mrb[0].mxu0 %v1136
    %v1269 = vpop.f32.mrb[0].mxu0
    %v1270 = vadd.f32 0.0, %v1269
    %v1271 = vpop.f32.mrb[0].mxu0
    %1272 = vmatprep.mubr.f32.mxu0 0.0
    %1273 = vmatmul.mubr.f32.gmra.mrb[0].mxu0 %v1139
    %v1274 = vpop.f32.mrb[0].mxu0
    %v1275 = vadd.f32 0.0, %v1274
    %v1276 = vpop.f32.mrb[0].mxu0
    %1277 = vmatprep.mubr.f32.mxu0 0.0
    %1278 = vmatmul.mubr.f32.gmra.mrb[0].mxu0 %v1142
    %v1279 = vpop.f32.mrb[0].mxu0
    %v1280 = vadd.f32 0.0, %v1279
    %v1281 = vpop.f32.mrb[0].mxu0
    %1282 = vmatprep.mubr.f32.mxu0 0.0
    %1283 = vmatmul.mubr.f32.gmra.mrb[0].mxu0 %v1145
    %v1284 = vpop.f32.mrb[0].mxu0
    %v1285 = vadd.f32 0.0, %v1284
    %v1286 = vpop.f32.mrb[0].mxu0
    %1287 = vmatprep.mubr.f32.mxu0 0.0
    %1288 = vmatmul.mubr.f32.gmra.mrb[0].mxu0 %v1148
    %v1289 = vpop.f32.mrb[0].mxu0
    %v1290 = vadd.f32 0.0, %v1289
    %v1291 = vpop.f32.mrb[0].mxu0
    %1292 = vmatprep.mubr.f32.mxu0 0.0
    %1293 = vmatmul.mubr.f32.gmra.mrb[0].mxu0 %v1151
    %v1294 = vpop.f32.mrb[0].mxu0
    %v1295 = vadd.f32 0.0, %v1294
    %v1296 = vpop.f32.mrb[0].mxu0
    %1297 = vdwg.mxu0
    %v1298 = vmul.f32 %v1220, %v546
    %v1299 = vmul.f32 %v1225, %v551
    %v1300 = vmul.f32 %v1230, %v556
    %v1301 = vmul.f32 %v1235, %v561
    %v1302 = vmul.f32 %v1240, %v566
    %v1303 = vmul.f32 %v1245, %v571
    %v1304 = vmul.f32 %v1250, %v576
    %v1305 = vmul.f32 %v1255, %v581
    %v1306 = vmul.f32 %v1260, %v586
    %v1307 = vmul.f32 %v1265, %v591
    %v1308 = vmul.f32 %v1270, %v596
    %v1309 = vmul.f32 %v1275, %v601
    %v1310 = vmul.f32 %v1280, %v606
    %v1311 = vmul.f32 %v1285, %v611
    %v1312 = vmul.f32 %v1290, %v616
    %v1313 = vmul.f32 %v1295, %v621
    %v1314 = vsel %vm283, %v1298, 0.0
    %v1315 = vsel %vm283, %v1299, 0.0
    %v1316 = vadd.f32 %v1314, %v1315
    %v1317 = vsel %vm283, %v1300, 0.0
    %v1318 = vadd.f32 %v1316, %v1317
    %v1319 = vsel %vm283, %v1301, 0.0
    %v1320 = vadd.f32 %v1318, %v1319
    %v1321 = vsel %vm283, %v1302, 0.0
    %v1322 = vadd.f32 %v1320, %v1321
    %v1323 = vsel %vm283, %v1303, 0.0
    %v1324 = vadd.f32 %v1322, %v1323
    %v1325 = vsel %vm283, %v1304, 0.0
    %v1326 = vadd.f32 %v1324, %v1325
    %v1327 = vsel %vm283, %v1305, 0.0
    %v1328 = vadd.f32 %v1326, %v1327
    %v1329 = vsel %vm283, %v1306, 0.0
    %v1330 = vsel %vm283, %v1307, 0.0
    %v1331 = vadd.f32 %v1329, %v1330
    %v1332 = vsel %vm283, %v1308, 0.0
    %v1333 = vadd.f32 %v1331, %v1332
    %v1334 = vsel %vm283, %v1309, 0.0
    %v1335 = vadd.f32 %v1333, %v1334
    %v1336 = vsel %vm283, %v1310, 0.0
    %v1337 = vadd.f32 %v1335, %v1336
    %v1338 = vsel %vm283, %v1311, 0.0
    %v1339 = vadd.f32 %v1337, %v1338
    %v1340 = vsel %vm283, %v1312, 0.0
    %v1341 = vadd.f32 %v1339, %v1340
    %v1342 = vsel %vm283, %v1313, 0.0
    %v1343 = vadd.f32 %v1341, %v1342
    %v1344 = vadd.f32 %v187, %v1328
    %v1345 = vadd.f32 %v227, %v1343
    %1346 = vst.msk [vmem:[#allocation2] sm:$0xff] %vm283, %v1344
    %1347 = vst.msk [vmem:[#allocation2 + $0x8] sm:$0xff] %vm283, %v1345
    %v1348 = vld [vmem:[%s8] sm:$0x3]
    %v1349 = vld [vmem:[#allocation2] sm:$0x1]
    %v1350 = vld [vmem:[#allocation2 + $0x8] sm:$0x1]
    %v1351 = vld [vmem:[%s7] sm:$0xff]
    %v1352 = vld [vmem:[%s7 + $0x8] sm:$0xff]
    %v1353 = vld [vmem:[%s7 + $0x10] sm:$0xff]
    %v1354 = vld [vmem:[%s7 + $0x18] sm:$0xff]
    %v1357 = vrot.slane %v1350, 7
    %vm1358 = vcmask 1041409
    %v1359 = vsel %vm1358, %v1357, %v1349
    %v1360 = vsel %vm283, %v1359, 0
    %1362 = vmatprep.subr.mxu0 %v1352
    %1363 = vmatpush1.msra.mxu0 %v1351
    %1364 = vmatprep.subr.mxu0 %v1354
    %1365 = vmatpush1.msra.mxu0 %v1353
    %1366 = vmatprep.subr.mxu0 0.0
    %1367 = vmatpush1.msra.mxu0 0.0
    %1368 = vmatprep.subr.mxu0 0.0
    %1369 = vmatpush1.msra.mxu0 0.0
    %1370 = vmatprep.subr.mxu0 0.0
    %1371 = vmatpush1.msra.mxu0 0.0
    %1372 = vmatprep.subr.mxu0 0.0
    %1373 = vmatpush1.msra.mxu0 0.0
    %1374 = vmatprep.subr.mxu0 0.0
    %1375 = vmatpush1.msra.mxu0 0.0
    %1376 = vmatprep.subr.mxu0 0.0
    %1377 = vmatpush1.msra.mxu0 0.0
    %1378 = vmatprep.subr.mxu0 0.0
    %1379 = vmatpush1.msra.mxu0 0.0
    %1380 = vmatprep.subr.mxu0 0.0
    %1381 = vmatpush1.msra.mxu0 0.0
    %1382 = vmatprep.subr.mxu0 0.0
    %1383 = vmatpush1.msra.mxu0 0.0
    %1384 = vmatprep.subr.mxu0 0.0
    %1385 = vmatpush1.msra.mxu0 0.0
    %1386 = vmatprep.subr.mxu0 0.0
    %1387 = vmatpush1.msra.mxu0 0.0
    %1388 = vmatprep.subr.mxu0 0.0
    %1389 = vmatpush1.msra.mxu0 0.0
    %1390 = vmatprep.subr.mxu0 0.0
    %1391 = vmatpush1.msra.mxu0 0.0
    %1392 = vmatprep.subr.mxu0 0.0
    %1393 = vmatpush1.msra.mxu0 0.0
    %1394 = vmatprep.subr.mxu0 0.0
    %1395 = vmatpush1.msra.mxu0 0.0
    %1396 = vmatprep.subr.mxu0 0.0
    %1397 = vmatpush1.msra.mxu0 0.0
    %1398 = vmatprep.subr.mxu0 0.0
    %1399 = vmatpush1.msra.mxu0 0.0
    %1400 = vmatprep.subr.mxu0 0.0
    %1401 = vmatpush1.msra.mxu0 0.0
    %1402 = vmatprep.subr.mxu0 0.0
    %1403 = vmatpush1.msra.mxu0 0.0
    %1404 = vmatprep.subr.mxu0 0.0
    %1405 = vmatpush1.msra.mxu0 0.0
    %1406 = vmatprep.subr.mxu0 0.0
    %1407 = vmatpush1.msra.mxu0 0.0
    %1408 = vmatprep.subr.mxu0 0.0
    %1409 = vmatpush1.msra.mxu0 0.0
    %1410 = vmatprep.subr.mxu0 0.0
    %1411 = vmatpush1.msra.mxu0 0.0
    %1412 = vmatprep.subr.mxu0 0.0
    %1413 = vmatpush1.msra.mxu0 0.0
    %1414 = vmatprep.subr.mxu0 0.0
    %1415 = vmatpush1.msra.mxu0 0.0
    %1416 = vmatprep.subr.mxu0 0.0
    %1417 = vmatpush1.msra.mxu0 0.0
    %1418 = vmatprep.subr.mxu0 0.0
    %1419 = vmatpush1.msra.mxu0 0.0
    %1420 = vmatprep.subr.mxu0 0.0
    %1421 = vmatpush1.msra.mxu0 0.0
    %1422 = vmatprep.subr.mxu0 0.0
    %1423 = vmatpush1.msra.mxu0 0.0
    %1424 = vmatprep.subr.mxu0 0.0
    %1425 = vmatpush1.msra.mxu0 0.0
    %1426 = vmatprep.mubr.f32.mxu0 0.0
    %1427 = vmatmul.mubr.f32.gmra.mrb[0].mxu0 %v1360
    %v1428 = vpop.f32.mrb[0].mxu0
    %v1429 = vadd.f32 0.0, %v1428
    %v1430 = vpop.f32.mrb[0].mxu0
    %v1431 = vadd.f32 0.0, %v1430
    %1432 = vdwg.mxu0
    %v1434 = vlaneseq
    %v1435 = vshrl.u32 %v1434, 7
    %v1436 = vsub.s32 0, %v1435
    %v1437 = vrot.slane %v1348, %v1436
    %v1438 = vlaneseq
    %v1439 = vshrl.u32 %v1438, 7
    %v1440 = vsub.s32 1, %v1439
    %v1441 = vrot.slane %v1348, %v1440
    %v1444 = vadd.f32 %v1437, %v1429
    %v1445 = vadd.f32 %v1441, %v1431
    %v1446 = vld [vmem:[#allocation2 + $0x1] sm:$0x1]
    %v1447 = vld [vmem:[#allocation2 + $0x9] sm:$0x1]
    %s1448 = scalar_lea.vmem %s7, 32
    %v1449 = vld [vmem:[%s1448] sm:$0xff]
    %v1450 = vld [vmem:[%s1448 + $0x8] sm:$0xff]
    %v1451 = vld [vmem:[%s1448 + $0x10] sm:$0xff]
    %v1452 = vld [vmem:[%s1448 + $0x18] sm:$0xff]
    %v1455 = vrot.slane %v1447, 7
    %v1456 = vsel %vm1358, %v1455, %v1446
    %v1457 = vsel %vm283, %v1456, 0
    %1459 = vmatprep.subr.mxu0 %v1450
    %1460 = vmatpush1.msra.mxu0 %v1449
    %1461 = vmatprep.subr.mxu0 %v1452
    %1462 = vmatpush1.msra.mxu0 %v1451
    %1463 = vmatprep.subr.mxu0 0.0
    %1464 = vmatpush1.msra.mxu0 0.0
    %1465 = vmatprep.subr.mxu0 0.0
    %1466 = vmatpush1.msra.mxu0 0.0
    %1467 = vmatprep.subr.mxu0 0.0
    %1468 = vmatpush1.msra.mxu0 0.0
    %1469 = vmatprep.subr.mxu0 0.0
    %1470 = vmatpush1.msra.mxu0 0.0
    %1471 = vmatprep.subr.mxu0 0.0
    %1472 = vmatpush1.msra.mxu0 0.0
    %1473 = vmatprep.subr.mxu0 0.0
    %1474 = vmatpush1.msra.mxu0 0.0
    %1475 = vmatprep.subr.mxu0 0.0
    %1476 = vmatpush1.msra.mxu0 0.0
    %1477 = vmatprep.subr.mxu0 0.0
    %1478 = vmatpush1.msra.mxu0 0.0
    %1479 = vmatprep.subr.mxu0 0.0
    %1480 = vmatpush1.msra.mxu0 0.0
    %1481 = vmatprep.subr.mxu0 0.0
    %1482 = vmatpush1.msra.mxu0 0.0
    %1483 = vmatprep.subr.mxu0 0.0
    %1484 = vmatpush1.msra.mxu0 0.0
    %1485 = vmatprep.subr.mxu0 0.0
    %1486 = vmatpush1.msra.mxu0 0.0
    %1487 = vmatprep.subr.mxu0 0.0
    %1488 = vmatpush1.msra.mxu0 0.0
    %1489 = vmatprep.subr.mxu0 0.0
    %1490 = vmatpush1.msra.mxu0 0.0
    %1491 = vmatprep.subr.mxu0 0.0
    %1492 = vmatpush1.msra.mxu0 0.0
    %1493 = vmatprep.subr.mxu0 0.0
    %1494 = vmatpush1.msra.mxu0 0.0
    %1495 = vmatprep.subr.mxu0 0.0
    %1496 = vmatpush1.msra.mxu0 0.0
    %1497 = vmatprep.subr.mxu0 0.0
    %1498 = vmatpush1.msra.mxu0 0.0
    %1499 = vmatprep.subr.mxu0 0.0
    %1500 = vmatpush1.msra.mxu0 0.0
    %1501 = vmatprep.subr.mxu0 0.0
    %1502 = vmatpush1.msra.mxu0 0.0
    %1503 = vmatprep.subr.mxu0 0.0
    %1504 = vmatpush1.msra.mxu0 0.0
    %1505 = vmatprep.subr.mxu0 0.0
    %1506 = vmatpush1.msra.mxu0 0.0
    %1507 = vmatprep.subr.mxu0 0.0
    %1508 = vmatpush1.msra.mxu0 0.0
    %1509 = vmatprep.subr.mxu0 0.0
    %1510 = vmatpush1.msra.mxu0 0.0
    %1511 = vmatprep.subr.mxu0 0.0
    %1512 = vmatpush1.msra.mxu0 0.0
    %1513 = vmatprep.subr.mxu0 0.0
    %1514 = vmatpush1.msra.mxu0 0.0
    %1515 = vmatprep.subr.mxu0 0.0
    %1516 = vmatpush1.msra.mxu0 0.0
    %1517 = vmatprep.subr.mxu0 0.0
    %1518 = vmatpush1.msra.mxu0 0.0
    %1519 = vmatprep.subr.mxu0 0.0
    %1520 = vmatpush1.msra.mxu0 0.0
    %1521 = vmatprep.subr.mxu0 0.0
    %1522 = vmatpush1.msra.mxu0 0.0
    %1523 = vmatprep.mubr.f32.mxu0 0.0
    %1524 = vmatmul.mubr.f32.gmra.mrb[0].mxu0 %v1457
    %v1525 = vpop.f32.mrb[0].mxu0
    %v1526 = vadd.f32 0.0, %v1525
    %v1527 = vpop.f32.mrb[0].mxu0
    %v1528 = vadd.f32 0.0, %v1527
    %1529 = vdwg.mxu0
    %v1530 = vadd.f32 %v1444, %v1526
    %v1531 = vadd.f32 %v1445, %v1528
    %v1532 = vld [vmem:[#allocation2 + $0x2] sm:$0x1]
    %v1533 = vld [vmem:[#allocation2 + $0xa] sm:$0x1]
    %s1534 = scalar_lea.vmem %s7, 64
    %v1535 = vld [vmem:[%s1534] sm:$0xff]
    %v1536 = vld [vmem:[%s1534 + $0x8] sm:$0xff]
    %v1537 = vld [vmem:[%s1534 + $0x10] sm:$0xff]
    %v1538 = vld [vmem:[%s1534 + $0x18] sm:$0xff]
    %v1541 = vrot.slane %v1533, 7
    %v1542 = vsel %vm1358, %v1541, %v1532
    %v1543 = vsel %vm283, %v1542, 0
    %1545 = vmatprep.subr.mxu0 %v1536
    %1546 = vmatpush1.msra.mxu0 %v1535
    %1547 = vmatprep.subr.mxu0 %v1538
    %1548 = vmatpush1.msra.mxu0 %v1537
    %1549 = vmatprep.subr.mxu0 0.0
    %1550 = vmatpush1.msra.mxu0 0.0
    %1551 = vmatprep.subr.mxu0 0.0
    %1552 = vmatpush1.msra.mxu0 0.0
    %1553 = vmatprep.subr.mxu0 0.0
    %1554 = vmatpush1.msra.mxu0 0.0
    %1555 = vmatprep.subr.mxu0 0.0
    %1556 = vmatpush1.msra.mxu0 0.0
    %1557 = vmatprep.subr.mxu0 0.0
    %1558 = vmatpush1.msra.mxu0 0.0
    %1559 = vmatprep.subr.mxu0 0.0
    %1560 = vmatpush1.msra.mxu0 0.0
    %1561 = vmatprep.subr.mxu0 0.0
    %1562 = vmatpush1.msra.mxu0 0.0
    %1563 = vmatprep.subr.mxu0 0.0
    %1564 = vmatpush1.msra.mxu0 0.0
    %1565 = vmatprep.subr.mxu0 0.0
    %1566 = vmatpush1.msra.mxu0 0.0
    %1567 = vmatprep.subr.mxu0 0.0
    %1568 = vmatpush1.msra.mxu0 0.0
    %1569 = vmatprep.subr.mxu0 0.0
    %1570 = vmatpush1.msra.mxu0 0.0
    %1571 = vmatprep.subr.mxu0 0.0
    %1572 = vmatpush1.msra.mxu0 0.0
    %1573 = vmatprep.subr.mxu0 0.0
    %1574 = vmatpush1.msra.mxu0 0.0
    %1575 = vmatprep.subr.mxu0 0.0
    %1576 = vmatpush1.msra.mxu0 0.0
    %1577 = vmatprep.subr.mxu0 0.0
    %1578 = vmatpush1.msra.mxu0 0.0
    %1579 = vmatprep.subr.mxu0 0.0
    %1580 = vmatpush1.msra.mxu0 0.0
    %1581 = vmatprep.subr.mxu0 0.0
    %1582 = vmatpush1.msra.mxu0 0.0
    %1583 = vmatprep.subr.mxu0 0.0
    %1584 = vmatpush1.msra.mxu0 0.0
    %1585 = vmatprep.subr.mxu0 0.0
    %1586 = vmatpush1.msra.mxu0 0.0
    %1587 = vmatprep.subr.mxu0 0.0
    %1588 = vmatpush1.msra.mxu0 0.0
    %1589 = vmatprep.subr.mxu0 0.0
    %1590 = vmatpush1.msra.mxu0 0.0
    %1591 = vmatprep.subr.mxu0 0.0
    %1592 = vmatpush1.msra.mxu0 0.0
    %1593 = vmatprep.subr.mxu0 0.0
    %1594 = vmatpush1.msra.mxu0 0.0
    %1595 = vmatprep.subr.mxu0 0.0
    %1596 = vmatpush1.msra.mxu0 0.0
    %1597 = vmatprep.subr.mxu0 0.0
    %1598 = vmatpush1.msra.mxu0 0.0
    %1599 = vmatprep.subr.mxu0 0.0
    %1600 = vmatpush1.msra.mxu0 0.0
    %1601 = vmatprep.subr.mxu0 0.0
    %1602 = vmatpush1.msra.mxu0 0.0
    %1603 = vmatprep.subr.mxu0 0.0
    %1604 = vmatpush1.msra.mxu0 0.0
    %1605 = vmatprep.subr.mxu0 0.0
    %1606 = vmatpush1.msra.mxu0 0.0
    %1607 = vmatprep.subr.mxu0 0.0
    %1608 = vmatpush1.msra.mxu0 0.0
    %1609 = vmatprep.mubr.f32.mxu0 0.0
    %1610 = vmatmul.mubr.f32.gmra.mrb[0].mxu0 %v1543
    %v1611 = vpop.f32.mrb[0].mxu0
    %v1612 = vadd.f32 0.0, %v1611
    %v1613 = vpop.f32.mrb[0].mxu0
    %v1614 = vadd.f32 0.0, %v1613
    %1615 = vdwg.mxu0
    %v1616 = vadd.f32 %v1530, %v1612
    %v1617 = vadd.f32 %v1531, %v1614
    %v1618 = vld [vmem:[#allocation2 + $0x3] sm:$0x1]
    %v1619 = vld [vmem:[#allocation2 + $0xb] sm:$0x1]
    %s1620 = scalar_lea.vmem %s7, 96
    %v1621 = vld [vmem:[%s1620] sm:$0xff]
    %v1622 = vld [vmem:[%s1620 + $0x8] sm:$0xff]
    %v1623 = vld [vmem:[%s1620 + $0x10] sm:$0xff]
    %v1624 = vld [vmem:[%s1620 + $0x18] sm:$0xff]
    %v1627 = vrot.slane %v1619, 7
    %v1628 = vsel %vm1358, %v1627, %v1618
    %v1629 = vsel %vm283, %v1628, 0
    %1631 = vmatprep.subr.mxu0 %v1622
    %1632 = vmatpush1.msra.mxu0 %v1621
    %1633 = vmatprep.subr.mxu0 %v1624
    %1634 = vmatpush1.msra.mxu0 %v1623
    %1635 = vmatprep.subr.mxu0 0.0
    %1636 = vmatpush1.msra.mxu0 0.0
    %1637 = vmatprep.subr.mxu0 0.0
    %1638 = vmatpush1.msra.mxu0 0.0
    %1639 = vmatprep.subr.mxu0 0.0
    %1640 = vmatpush1.msra.mxu0 0.0
    %1641 = vmatprep.subr.mxu0 0.0
    %1642 = vmatpush1.msra.mxu0 0.0
    %1643 = vmatprep.subr.mxu0 0.0
    %1644 = vmatpush1.msra.mxu0 0.0
    %1645 = vmatprep.subr.mxu0 0.0
    %1646 = vmatpush1.msra.mxu0 0.0
    %1647 = vmatprep.subr.mxu0 0.0
    %1648 = vmatpush1.msra.mxu0 0.0
    %1649 = vmatprep.subr.mxu0 0.0
    %1650 = vmatpush1.msra.mxu0 0.0
    %1651 = vmatprep.subr.mxu0 0.0
    %1652 = vmatpush1.msra.mxu0 0.0
    %1653 = vmatprep.subr.mxu0 0.0
    %1654 = vmatpush1.msra.mxu0 0.0
    %1655 = vmatprep.subr.mxu0 0.0
    %1656 = vmatpush1.msra.mxu0 0.0
    %1657 = vmatprep.subr.mxu0 0.0
    %1658 = vmatpush1.msra.mxu0 0.0
    %1659 = vmatprep.subr.mxu0 0.0
    %1660 = vmatpush1.msra.mxu0 0.0
    %1661 = vmatprep.subr.mxu0 0.0
    %1662 = vmatpush1.msra.mxu0 0.0
    %1663 = vmatprep.subr.mxu0 0.0
    %1664 = vmatpush1.msra.mxu0 0.0
    %1665 = vmatprep.subr.mxu0 0.0
    %1666 = vmatpush1.msra.mxu0 0.0
    %1667 = vmatprep.subr.mxu0 0.0
    %1668 = vmatpush1.msra.mxu0 0.0
    %1669 = vmatprep.subr.mxu0 0.0
    %1670 = vmatpush1.msra.mxu0 0.0
    %1671 = vmatprep.subr.mxu0 0.0
    %1672 = vmatpush1.msra.mxu0 0.0
    %1673 = vmatprep.subr.mxu0 0.0
    %1674 = vmatpush1.msra.mxu0 0.0
    %1675 = vmatprep.subr.mxu0 0.0
    %1676 = vmatpush1.msra.mxu0 0.0
    %1677 = vmatprep.subr.mxu0 0.0
    %1678 = vmatpush1.msra.mxu0 0.0
    %1679 = vmatprep.subr.mxu0 0.0
    %1680 = vmatpush1.msra.mxu0 0.0
    %1681 = vmatprep.subr.mxu0 0.0
    %1682 = vmatpush1.msra.mxu0 0.0
    %1683 = vmatprep.subr.mxu0 0.0
    %1684 = vmatpush1.msra.mxu0 0.0
    %1685 = vmatprep.subr.mxu0 0.0
    %1686 = vmatpush1.msra.mxu0 0.0
    %1687 = vmatprep.subr.mxu0 0.0
    %1688 = vmatpush1.msra.mxu0 0.0
    %1689 = vmatprep.subr.mxu0 0.0
    %1690 = vmatpush1.msra.mxu0 0.0
    %1691 = vmatprep.subr.mxu0 0.0
    %1692 = vmatpush1.msra.mxu0 0.0
    %1693 = vmatprep.subr.mxu0 0.0
    %1694 = vmatpush1.msra.mxu0 0.0
    %1695 = vmatprep.mubr.f32.mxu0 0.0
    %1696 = vmatmul.mubr.f32.gmra.mrb[0].mxu0 %v1629
    %v1697 = vpop.f32.mrb[0].mxu0
    %v1698 = vadd.f32 0.0, %v1697
    %v1699 = vpop.f32.mrb[0].mxu0
    %v1700 = vadd.f32 0.0, %v1699
    %1701 = vdwg.mxu0
    %v1702 = vadd.f32 %v1616, %v1698
    %v1703 = vadd.f32 %v1617, %v1700
    %v1704 = vld [vmem:[#allocation2 + $0x4] sm:$0x1]
    %v1705 = vld [vmem:[#allocation2 + $0xc] sm:$0x1]
    %s1706 = scalar_lea.vmem %s7, 128
    %v1707 = vld [vmem:[%s1706] sm:$0xff]
    %v1708 = vld [vmem:[%s1706 + $0x8] sm:$0xff]
    %v1709 = vld [vmem:[%s1706 + $0x10] sm:$0xff]
    %v1710 = vld [vmem:[%s1706 + $0x18] sm:$0xff]
    %v1713 = vrot.slane %v1705, 7
    %v1714 = vsel %vm1358, %v1713, %v1704
    %v1715 = vsel %vm283, %v1714, 0
    %1717 = vmatprep.subr.mxu0 %v1708
    %1718 = vmatpush1.msra.mxu0 %v1707
    %1719 = vmatprep.subr.mxu0 %v1710
    %1720 = vmatpush1.msra.mxu0 %v1709
    %1721 = vmatprep.subr.mxu0 0.0
    %1722 = vmatpush1.msra.mxu0 0.0
    %1723 = vmatprep.subr.mxu0 0.0
    %1724 = vmatpush1.msra.mxu0 0.0
    %1725 = vmatprep.subr.mxu0 0.0
    %1726 = vmatpush1.msra.mxu0 0.0
    %1727 = vmatprep.subr.mxu0 0.0
    %1728 = vmatpush1.msra.mxu0 0.0
    %1729 = vmatprep.subr.mxu0 0.0
    %1730 = vmatpush1.msra.mxu0 0.0
    %1731 = vmatprep.subr.mxu0 0.0
    %1732 = vmatpush1.msra.mxu0 0.0
    %1733 = vmatprep.subr.mxu0 0.0
    %1734 = vmatpush1.msra.mxu0 0.0
    %1735 = vmatprep.subr.mxu0 0.0
    %1736 = vmatpush1.msra.mxu0 0.0
    %1737 = vmatprep.subr.mxu0 0.0
    %1738 = vmatpush1.msra.mxu0 0.0
    %1739 = vmatprep.subr.mxu0 0.0
    %1740 = vmatpush1.msra.mxu0 0.0
    %1741 = vmatprep.subr.mxu0 0.0
    %1742 = vmatpush1.msra.mxu0 0.0
    %1743 = vmatprep.subr.mxu0 0.0
    %1744 = vmatpush1.msra.mxu0 0.0
    %1745 = vmatprep.subr.mxu0 0.0
    %1746 = vmatpush1.msra.mxu0 0.0
    %1747 = vmatprep.subr.mxu0 0.0
    %1748 = vmatpush1.msra.mxu0 0.0
    %1749 = vmatprep.subr.mxu0 0.0
    %1750 = vmatpush1.msra.mxu0 0.0
    %1751 = vmatprep.subr.mxu0 0.0
    %1752 = vmatpush1.msra.mxu0 0.0
    %1753 = vmatprep.subr.mxu0 0.0
    %1754 = vmatpush1.msra.mxu0 0.0
    %1755 = vmatprep.subr.mxu0 0.0
    %1756 = vmatpush1.msra.mxu0 0.0
    %1757 = vmatprep.subr.mxu0 0.0
    %1758 = vmatpush1.msra.mxu0 0.0
    %1759 = vmatprep.subr.mxu0 0.0
    %1760 = vmatpush1.msra.mxu0 0.0
    %1761 = vmatprep.subr.mxu0 0.0
    %1762 = vmatpush1.msra.mxu0 0.0
    %1763 = vmatprep.subr.mxu0 0.0
    %1764 = vmatpush1.msra.mxu0 0.0
    %1765 = vmatprep.subr.mxu0 0.0
    %1766 = vmatpush1.msra.mxu0 0.0
    %1767 = vmatprep.subr.mxu0 0.0
    %1768 = vmatpush1.msra.mxu0 0.0
    %1769 = vmatprep.subr.mxu0 0.0
    %1770 = vmatpush1.msra.mxu0 0.0
    %1771 = vmatprep.subr.mxu0 0.0
    %1772 = vmatpush1.msra.mxu0 0.0
    %1773 = vmatprep.subr.mxu0 0.0
    %1774 = vmatpush1.msra.mxu0 0.0
    %1775 = vmatprep.subr.mxu0 0.0
    %1776 = vmatpush1.msra.mxu0 0.0
    %1777 = vmatprep.subr.mxu0 0.0
    %1778 = vmatpush1.msra.mxu0 0.0
    %1779 = vmatprep.subr.mxu0 0.0
    %1780 = vmatpush1.msra.mxu0 0.0
    %1781 = vmatprep.mubr.f32.mxu0 0.0
    %1782 = vmatmul.mubr.f32.gmra.mrb[0].mxu0 %v1715
    %v1783 = vpop.f32.mrb[0].mxu0
    %v1784 = vadd.f32 0.0, %v1783
    %v1785 = vpop.f32.mrb[0].mxu0
    %v1786 = vadd.f32 0.0, %v1785
    %1787 = vdwg.mxu0
    %v1788 = vadd.f32 %v1702, %v1784
    %v1789 = vadd.f32 %v1703, %v1786
    %v1790 = vld [vmem:[#allocation2 + $0x5] sm:$0x1]
    %v1791 = vld [vmem:[#allocation2 + $0xd] sm:$0x1]
    %s1792 = scalar_lea.vmem %s7, 160
    %v1793 = vld [vmem:[%s1792] sm:$0xff]
    %v1794 = vld [vmem:[%s1792 + $0x8] sm:$0xff]
    %v1795 = vld [vmem:[%s1792 + $0x10] sm:$0xff]
    %v1796 = vld [vmem:[%s1792 + $0x18] sm:$0xff]
    %v1799 = vrot.slane %v1791, 7
    %v1800 = vsel %vm1358, %v1799, %v1790
    %v1801 = vsel %vm283, %v1800, 0
    %1803 = vmatprep.subr.mxu0 %v1794
    %1804 = vmatpush1.msra.mxu0 %v1793
    %1805 = vmatprep.subr.mxu0 %v1796
    %1806 = vmatpush1.msra.mxu0 %v1795
    %1807 = vmatprep.subr.mxu0 0.0
    %1808 = vmatpush1.msra.mxu0 0.0
    %1809 = vmatprep.subr.mxu0 0.0
    %1810 = vmatpush1.msra.mxu0 0.0
    %1811 = vmatprep.subr.mxu0 0.0
    %1812 = vmatpush1.msra.mxu0 0.0
    %1813 = vmatprep.subr.mxu0 0.0
    %1814 = vmatpush1.msra.mxu0 0.0
    %1815 = vmatprep.subr.mxu0 0.0
    %1816 = vmatpush1.msra.mxu0 0.0
    %1817 = vmatprep.subr.mxu0 0.0
    %1818 = vmatpush1.msra.mxu0 0.0
    %1819 = vmatprep.subr.mxu0 0.0
    %1820 = vmatpush1.msra.mxu0 0.0
    %1821 = vmatprep.subr.mxu0 0.0
    %1822 = vmatpush1.msra.mxu0 0.0
    %1823 = vmatprep.subr.mxu0 0.0
    %1824 = vmatpush1.msra.mxu0 0.0
    %1825 = vmatprep.subr.mxu0 0.0
    %1826 = vmatpush1.msra.mxu0 0.0
    %1827 = vmatprep.subr.mxu0 0.0
    %1828 = vmatpush1.msra.mxu0 0.0
    %1829 = vmatprep.subr.mxu0 0.0
    %1830 = vmatpush1.msra.mxu0 0.0
    %1831 = vmatprep.subr.mxu0 0.0
    %1832 = vmatpush1.msra.mxu0 0.0
    %1833 = vmatprep.subr.mxu0 0.0
    %1834 = vmatpush1.msra.mxu0 0.0
    %1835 = vmatprep.subr.mxu0 0.0
    %1836 = vmatpush1.msra.mxu0 0.0
    %1837 = vmatprep.subr.mxu0 0.0
    %1838 = vmatpush1.msra.mxu0 0.0
    %1839 = vmatprep.subr.mxu0 0.0
    %1840 = vmatpush1.msra.mxu0 0.0
    %1841 = vmatprep.subr.mxu0 0.0
    %1842 = vmatpush1.msra.mxu0 0.0
    %1843 = vmatprep.subr.mxu0 0.0
    %1844 = vmatpush1.msra.mxu0 0.0
    %1845 = vmatprep.subr.mxu0 0.0
    %1846 = vmatpush1.msra.mxu0 0.0
    %1847 = vmatprep.subr.mxu0 0.0
    %1848 = vmatpush1.msra.mxu0 0.0
    %1849 = vmatprep.subr.mxu0 0.0
    %1850 = vmatpush1.msra.mxu0 0.0
    %1851 = vmatprep.subr.mxu0 0.0
    %1852 = vmatpush1.msra.mxu0 0.0
    %1853 = vmatprep.subr.mxu0 0.0
    %1854 = vmatpush1.msra.mxu0 0.0
    %1855 = vmatprep.subr.mxu0 0.0
    %1856 = vmatpush1.msra.mxu0 0.0
    %1857 = vmatprep.subr.mxu0 0.0
    %1858 = vmatpush1.msra.mxu0 0.0
    %1859 = vmatprep.subr.mxu0 0.0
    %1860 = vmatpush1.msra.mxu0 0.0
    %1861 = vmatprep.subr.mxu0 0.0
    %1862 = vmatpush1.msra.mxu0 0.0
    %1863 = vmatprep.subr.mxu0 0.0
    %1864 = vmatpush1.msra.mxu0 0.0
    %1865 = vmatprep.subr.mxu0 0.0
    %1866 = vmatpush1.msra.mxu0 0.0
    %1867 = vmatprep.mubr.f32.mxu0 0.0
    %1868 = vmatmul.mubr.f32.gmra.mrb[0].mxu0 %v1801
    %v1869 = vpop.f32.mrb[0].mxu0
    %v1870 = vadd.f32 0.0, %v1869
    %v1871 = vpop.f32.mrb[0].mxu0
    %v1872 = vadd.f32 0.0, %v1871
    %1873 = vdwg.mxu0
    %v1874 = vadd.f32 %v1788, %v1870
    %v1875 = vadd.f32 %v1789, %v1872
    %v1876 = vld [vmem:[#allocation2 + $0x6] sm:$0x1]
    %v1877 = vld [vmem:[#allocation2 + $0xe] sm:$0x1]
    %s1878 = scalar_lea.vmem %s7, 192
    %v1879 = vld [vmem:[%s1878] sm:$0xff]
    %v1880 = vld [vmem:[%s1878 + $0x8] sm:$0xff]
    %v1881 = vld [vmem:[%s1878 + $0x10] sm:$0xff]
    %v1882 = vld [vmem:[%s1878 + $0x18] sm:$0xff]
    %v1885 = vrot.slane %v1877, 7
    %v1886 = vsel %vm1358, %v1885, %v1876
    %v1887 = vsel %vm283, %v1886, 0
    %1889 = vmatprep.subr.mxu0 %v1880
    %1890 = vmatpush1.msra.mxu0 %v1879
    %1891 = vmatprep.subr.mxu0 %v1882
    %1892 = vmatpush1.msra.mxu0 %v1881
    %1893 = vmatprep.subr.mxu0 0.0
    %1894 = vmatpush1.msra.mxu0 0.0
    %1895 = vmatprep.subr.mxu0 0.0
    %1896 = vmatpush1.msra.mxu0 0.0
    %1897 = vmatprep.subr.mxu0 0.0
    %1898 = vmatpush1.msra.mxu0 0.0
    %1899 = vmatprep.subr.mxu0 0.0
    %1900 = vmatpush1.msra.mxu0 0.0
    %1901 = vmatprep.subr.mxu0 0.0
    %1902 = vmatpush1.msra.mxu0 0.0
    %1903 = vmatprep.subr.mxu0 0.0
    %1904 = vmatpush1.msra.mxu0 0.0
    %1905 = vmatprep.subr.mxu0 0.0
    %1906 = vmatpush1.msra.mxu0 0.0
    %1907 = vmatprep.subr.mxu0 0.0
    %1908 = vmatpush1.msra.mxu0 0.0
    %1909 = vmatprep.subr.mxu0 0.0
    %1910 = vmatpush1.msra.mxu0 0.0
    %1911 = vmatprep.subr.mxu0 0.0
    %1912 = vmatpush1.msra.mxu0 0.0
    %1913 = vmatprep.subr.mxu0 0.0
    %1914 = vmatpush1.msra.mxu0 0.0
    %1915 = vmatprep.subr.mxu0 0.0
    %1916 = vmatpush1.msra.mxu0 0.0
    %1917 = vmatprep.subr.mxu0 0.0
    %1918 = vmatpush1.msra.mxu0 0.0
    %1919 = vmatprep.subr.mxu0 0.0
    %1920 = vmatpush1.msra.mxu0 0.0
    %1921 = vmatprep.subr.mxu0 0.0
    %1922 = vmatpush1.msra.mxu0 0.0
    %1923 = vmatprep.subr.mxu0 0.0
    %1924 = vmatpush1.msra.mxu0 0.0
    %1925 = vmatprep.subr.mxu0 0.0
    %1926 = vmatpush1.msra.mxu0 0.0
    %1927 = vmatprep.subr.mxu0 0.0
    %1928 = vmatpush1.msra.mxu0 0.0
    %1929 = vmatprep.subr.mxu0 0.0
    %1930 = vmatpush1.msra.mxu0 0.0
    %1931 = vmatprep.subr.mxu0 0.0
    %1932 = vmatpush1.msra.mxu0 0.0
    %1933 = vmatprep.subr.mxu0 0.0
    %1934 = vmatpush1.msra.mxu0 0.0
    %1935 = vmatprep.subr.mxu0 0.0
    %1936 = vmatpush1.msra.mxu0 0.0
    %1937 = vmatprep.subr.mxu0 0.0
    %1938 = vmatpush1.msra.mxu0 0.0
    %1939 = vmatprep.subr.mxu0 0.0
    %1940 = vmatpush1.msra.mxu0 0.0
    %1941 = vmatprep.subr.mxu0 0.0
    %1942 = vmatpush1.msra.mxu0 0.0
    %1943 = vmatprep.subr.mxu0 0.0
    %1944 = vmatpush1.msra.mxu0 0.0
    %1945 = vmatprep.subr.mxu0 0.0
    %1946 = vmatpush1.msra.mxu0 0.0
    %1947 = vmatprep.subr.mxu0 0.0
    %1948 = vmatpush1.msra.mxu0 0.0
    %1949 = vmatprep.subr.mxu0 0.0
    %1950 = vmatpush1.msra.mxu0 0.0
    %1951 = vmatprep.subr.mxu0 0.0
    %1952 = vmatpush1.msra.mxu0 0.0
    %1953 = vmatprep.mubr.f32.mxu0 0.0
    %1954 = vmatmul.mubr.f32.gmra.mrb[0].mxu0 %v1887
    %v1955 = vpop.f32.mrb[0].mxu0
    %v1956 = vadd.f32 0.0, %v1955
    %v1957 = vpop.f32.mrb[0].mxu0
    %v1958 = vadd.f32 0.0, %v1957
    %1959 = vdwg.mxu0
    %v1960 = vadd.f32 %v1874, %v1956
    %v1961 = vadd.f32 %v1875, %v1958
    %v1962 = vld [vmem:[#allocation2 + $0x7] sm:$0x1]
    %v1963 = vld [vmem:[#allocation2 + $0xf] sm:$0x1]
    %s1964 = scalar_lea.vmem %s7, 224
    %v1965 = vld [vmem:[%s1964] sm:$0xff]
    %v1966 = vld [vmem:[%s1964 + $0x8] sm:$0xff]
    %v1967 = vld [vmem:[%s1964 + $0x10] sm:$0xff]
    %v1968 = vld [vmem:[%s1964 + $0x18] sm:$0xff]
    %v1971 = vrot.slane %v1963, 7
    %v1972 = vsel %vm1358, %v1971, %v1962
    %v1973 = vsel %vm283, %v1972, 0
    %1975 = vmatprep.subr.mxu0 %v1966
    %1976 = vmatpush1.msra.mxu0 %v1965
    %1977 = vmatprep.subr.mxu0 %v1968
    %1978 = vmatpush1.msra.mxu0 %v1967
    %1979 = vmatprep.subr.mxu0 0.0
    %1980 = vmatpush1.msra.mxu0 0.0
    %1981 = vmatprep.subr.mxu0 0.0
    %1982 = vmatpush1.msra.mxu0 0.0
    %1983 = vmatprep.subr.mxu0 0.0
    %1984 = vmatpush1.msra.mxu0 0.0
    %1985 = vmatprep.subr.mxu0 0.0
    %1986 = vmatpush1.msra.mxu0 0.0
    %1987 = vmatprep.subr.mxu0 0.0
    %1988 = vmatpush1.msra.mxu0 0.0
    %1989 = vmatprep.subr.mxu0 0.0
    %1990 = vmatpush1.msra.mxu0 0.0
    %1991 = vmatprep.subr.mxu0 0.0
    %1992 = vmatpush1.msra.mxu0 0.0
    %1993 = vmatprep.subr.mxu0 0.0
    %1994 = vmatpush1.msra.mxu0 0.0
    %1995 = vmatprep.subr.mxu0 0.0
    %1996 = vmatpush1.msra.mxu0 0.0
    %1997 = vmatprep.subr.mxu0 0.0
    %1998 = vmatpush1.msra.mxu0 0.0
    %1999 = vmatprep.subr.mxu0 0.0
    %2000 = vmatpush1.msra.mxu0 0.0
    %2001 = vmatprep.subr.mxu0 0.0
    %2002 = vmatpush1.msra.mxu0 0.0
    %2003 = vmatprep.subr.mxu0 0.0
    %2004 = vmatpush1.msra.mxu0 0.0
    %2005 = vmatprep.subr.mxu0 0.0
    %2006 = vmatpush1.msra.mxu0 0.0
    %2007 = vmatprep.subr.mxu0 0.0
    %2008 = vmatpush1.msra.mxu0 0.0
    %2009 = vmatprep.subr.mxu0 0.0
    %2010 = vmatpush1.msra.mxu0 0.0
    %2011 = vmatprep.subr.mxu0 0.0
    %2012 = vmatpush1.msra.mxu0 0.0
    %2013 = vmatprep.subr.mxu0 0.0
    %2014 = vmatpush1.msra.mxu0 0.0
    %2015 = vmatprep.subr.mxu0 0.0
    %2016 = vmatpush1.msra.mxu0 0.0
    %2017 = vmatprep.subr.mxu0 0.0
    %2018 = vmatpush1.msra.mxu0 0.0
    %2019 = vmatprep.subr.mxu0 0.0
    %2020 = vmatpush1.msra.mxu0 0.0
    %2021 = vmatprep.subr.mxu0 0.0
    %2022 = vmatpush1.msra.mxu0 0.0
    %2023 = vmatprep.subr.mxu0 0.0
    %2024 = vmatpush1.msra.mxu0 0.0
    %2025 = vmatprep.subr.mxu0 0.0
    %2026 = vmatpush1.msra.mxu0 0.0
    %2027 = vmatprep.subr.mxu0 0.0
    %2028 = vmatpush1.msra.mxu0 0.0
    %2029 = vmatprep.subr.mxu0 0.0
    %2030 = vmatpush1.msra.mxu0 0.0
    %2031 = vmatprep.subr.mxu0 0.0
    %2032 = vmatpush1.msra.mxu0 0.0
    %2033 = vmatprep.subr.mxu0 0.0
    %2034 = vmatpush1.msra.mxu0 0.0
    %2035 = vmatprep.subr.mxu0 0.0
    %2036 = vmatpush1.msra.mxu0 0.0
    %2037 = vmatprep.subr.mxu0 0.0
    %2038 = vmatpush1.msra.mxu0 0.0
    %2039 = vmatprep.mubr.f32.mxu0 0.0
    %2040 = vmatmul.mubr.f32.gmra.mrb[0].mxu0 %v1973
    %v2041 = vpop.f32.mrb[0].mxu0
    %v2042 = vadd.f32 0.0, %v2041
    %v2043 = vpop.f32.mrb[0].mxu0
    %v2044 = vadd.f32 0.0, %v2043
    %2045 = vdwg.mxu0
    %v2046 = vadd.f32 %v1960, %v2042
    %v2047 = vadd.f32 %v1961, %v2044
    %v2048 = vmax.f32 %v2046, 0.0
    %v2049 = vmax.f32 %v2047, 0.0
    %v2050 = vld [vmem:[%s9] sm:$0xff]
    %v2051 = vld [vmem:[%s9 + $0x8] sm:$0xff]
    %v2052 = vld [vmem:[%s9 + $0x10] sm:$0xff]
    %v2053 = vld [vmem:[%s9 + $0x18] sm:$0xff]
    %v2054 = vld [vmem:[%s9 + $0x20] sm:$0xff]
    %v2055 = vld [vmem:[%s9 + $0x28] sm:$0xff]
    %v2056 = vld [vmem:[%s9 + $0x30] sm:$0xff]
    %v2057 = vld [vmem:[%s9 + $0x38] sm:$0xff]
    %v2058 = vld [vmem:[%s9 + $0x40] sm:$0xff]
    %v2059 = vld [vmem:[%s9 + $0x48] sm:$0xff]
    %v2060 = vld [vmem:[%s9 + $0x50] sm:$0xff]
    %v2061 = vld [vmem:[%s9 + $0x58] sm:$0xff]
    %v2062 = vld [vmem:[%s9 + $0x60] sm:$0xff]
    %v2063 = vld [vmem:[%s9 + $0x68] sm:$0xff]
    %v2064 = vld [vmem:[%s9 + $0x70] sm:$0xff]
    %v2065 = vld [vmem:[%s9 + $0x78] sm:$0xff]
    %v2066 = vld [vmem:[%s9 + $0x80] sm:$0xff]
    %v2067 = vld [vmem:[%s9 + $0x88] sm:$0xff]
    %v2068 = vld [vmem:[%s9 + $0x90] sm:$0xff]
    %v2069 = vld [vmem:[%s9 + $0x98] sm:$0xff]
    %v2070 = vld [vmem:[%s9 + $0xa0] sm:$0xff]
    %v2071 = vld [vmem:[%s9 + $0xa8] sm:$0xff]
    %v2072 = vld [vmem:[%s9 + $0xb0] sm:$0xff]
    %v2073 = vld [vmem:[%s9 + $0xb8] sm:$0xff]
    %v2074 = vld [vmem:[%s10] sm:$0x1]
    %v2076 = vlaneseq
    %v2077 = vshrl.u32 %v2076, 7
    %v2078 = vsub.s32 0, %v2077
    %v2079 = vrot.slane %v2074, %v2078
    %vm2081 = vcmask 523264
    %v2083 = vsel %vm2081, %v2049, 0
    %2085 = vmatprep.subr.mxu0 0.0
    %2086 = vmatpush1.msra.mxu0 %v2050
    %2087 = vmatprep.subr.mxu0 0.0
    %2088 = vmatpush1.msra.mxu0 %v2051
    %2089 = vmatprep.subr.mxu0 0.0
    %2090 = vmatpush1.msra.mxu0 %v2052
    %2091 = vmatprep.subr.mxu0 0.0
    %2092 = vmatpush1.msra.mxu0 %v2053
    %2093 = vmatprep.subr.mxu0 0.0
    %2094 = vmatpush1.msra.mxu0 %v2054
    %2095 = vmatprep.subr.mxu0 0.0
    %2096 = vmatpush1.msra.mxu0 %v2055
    %2097 = vmatprep.subr.mxu0 0.0
    %2098 = vmatpush1.msra.mxu0 %v2056
    %2099 = vmatprep.subr.mxu0 0.0
    %2100 = vmatpush1.msra.mxu0 %v2057
    %2101 = vmatprep.subr.mxu0 0.0
    %2102 = vmatpush1.msra.mxu0 %v2058
    %2103 = vmatprep.subr.mxu0 0.0
    %2104 = vmatpush1.msra.mxu0 %v2059
    %2105 = vmatprep.subr.mxu0 0.0
    %2106 = vmatpush1.msra.mxu0 %v2060
    %2107 = vmatprep.subr.mxu0 0.0
    %2108 = vmatpush1.msra.mxu0 %v2061
    %2109 = vmatprep.subr.mxu0 0.0
    %2110 = vmatpush1.msra.mxu0 %v2062
    %2111 = vmatprep.subr.mxu0 0.0
    %2112 = vmatpush1.msra.mxu0 %v2063
    %2113 = vmatprep.subr.mxu0 0.0
    %2114 = vmatpush1.msra.mxu0 %v2064
    %2115 = vmatprep.subr.mxu0 0.0
    %2116 = vmatpush1.msra.mxu0 %v2065
    %2117 = vmatprep.subr.mxu0 0.0
    %2118 = vmatpush1.msra.mxu0 %v2066
    %2119 = vmatprep.subr.mxu0 0.0
    %2120 = vmatpush1.msra.mxu0 %v2067
    %2121 = vmatprep.subr.mxu0 0.0
    %2122 = vmatpush1.msra.mxu0 %v2068
    %2123 = vmatprep.subr.mxu0 0.0
    %2124 = vmatpush1.msra.mxu0 %v2069
    %2125 = vmatprep.subr.mxu0 0.0
    %2126 = vmatpush1.msra.mxu0 %v2070
    %2127 = vmatprep.subr.mxu0 0.0
    %2128 = vmatpush1.msra.mxu0 %v2071
    %2129 = vmatprep.subr.mxu0 0.0
    %2130 = vmatpush1.msra.mxu0 %v2072
    %2131 = vmatprep.subr.mxu0 0.0
    %2132 = vmatpush1.msra.mxu0 %v2073
    %2133 = vmatprep.subr.mxu0 0.0
    %2134 = vmatpush1.msra.mxu0 0.0
    %2135 = vmatprep.subr.mxu0 0.0
    %2136 = vmatpush1.msra.mxu0 0.0
    %2137 = vmatprep.subr.mxu0 0.0
    %2138 = vmatpush1.msra.mxu0 0.0
    %2139 = vmatprep.subr.mxu0 0.0
    %2140 = vmatpush1.msra.mxu0 0.0
    %2141 = vmatprep.subr.mxu0 0.0
    %2142 = vmatpush1.msra.mxu0 0.0
    %2143 = vmatprep.subr.mxu0 0.0
    %2144 = vmatpush1.msra.mxu0 0.0
    %2145 = vmatprep.subr.mxu0 0.0
    %2146 = vmatpush1.msra.mxu0 0.0
    %2147 = vmatprep.subr.mxu0 0.0
    %2148 = vmatpush1.msra.mxu0 0.0
    %2149 = vmatprep.mubr.f32.mxu0 %v2083
    %2150 = vmatmul.mubr.f32.gmra.mrb[0].mxu0 %v2048
    %v2151 = vpop.f32.mrb[0].mxu0
    %v2152 = vadd.f32 %v2079, %v2151
    %v2153 = vpop.f32.mrb[0].mxu0
    %2154 = vdwg.mxu0
    %v2155 = vmax.f32 %v2152, 0.0
    %v2156 = vld [vmem:[%s11] sm:$0xff]
    %v2157 = vld [vmem:[%s11 + $0x8] sm:$0xff]
    %v2158 = vld [vmem:[%s11 + $0x10] sm:$0xff]
    %v2159 = vld [vmem:[%s11 + $0x18] sm:$0xff]
    %v2160 = vld [vmem:[%s12] sm:$0x1]
    %v2162 = vlaneseq
    %v2163 = vshrl.u32 %v2162, 7
    %v2164 = vsub.s32 0, %v2163
    %v2165 = vrot.slane %v2160, %v2164
    %v2168 = vsel %vm71, %v2155, 0
    %2170 = vmatprep.subr.mxu0 0.0
    %2171 = vmatpush1.msra.mxu0 %v2156
    %2172 = vmatprep.subr.mxu0 0.0
    %2173 = vmatpush1.msra.mxu0 %v2157
    %2174 = vmatprep.subr.mxu0 0.0
    %2175 = vmatpush1.msra.mxu0 %v2158
    %2176 = vmatprep.subr.mxu0 0.0
    %2177 = vmatpush1.msra.mxu0 %v2159
    %2178 = vmatprep.subr.mxu0 0.0
    %2179 = vmatpush1.msra.mxu0 0.0
    %2180 = vmatprep.subr.mxu0 0.0
    %2181 = vmatpush1.msra.mxu0 0.0
    %2182 = vmatprep.subr.mxu0 0.0
    %2183 = vmatpush1.msra.mxu0 0.0
    %2184 = vmatprep.subr.mxu0 0.0
    %2185 = vmatpush1.msra.mxu0 0.0
    %2186 = vmatprep.subr.mxu0 0.0
    %2187 = vmatpush1.msra.mxu0 0.0
    %2188 = vmatprep.subr.mxu0 0.0
    %2189 = vmatpush1.msra.mxu0 0.0
    %2190 = vmatprep.subr.mxu0 0.0
    %2191 = vmatpush1.msra.mxu0 0.0
    %2192 = vmatprep.subr.mxu0 0.0
    %2193 = vmatpush1.msra.mxu0 0.0
    %2194 = vmatprep.subr.mxu0 0.0
    %2195 = vmatpush1.msra.mxu0 0.0
    %2196 = vmatprep.subr.mxu0 0.0
    %2197 = vmatpush1.msra.mxu0 0.0
    %2198 = vmatprep.subr.mxu0 0.0
    %2199 = vmatpush1.msra.mxu0 0.0
    %2200 = vmatprep.subr.mxu0 0.0
    %2201 = vmatpush1.msra.mxu0 0.0
    %2202 = vmatprep.subr.mxu0 0.0
    %2203 = vmatpush1.msra.mxu0 0.0
    %2204 = vmatprep.subr.mxu0 0.0
    %2205 = vmatpush1.msra.mxu0 0.0
    %2206 = vmatprep.subr.mxu0 0.0
    %2207 = vmatpush1.msra.mxu0 0.0
    %2208 = vmatprep.subr.mxu0 0.0
    %2209 = vmatpush1.msra.mxu0 0.0
    %2210 = vmatprep.subr.mxu0 0.0
    %2211 = vmatpush1.msra.mxu0 0.0
    %2212 = vmatprep.subr.mxu0 0.0
    %2213 = vmatpush1.msra.mxu0 0.0
    %2214 = vmatprep.subr.mxu0 0.0
    %2215 = vmatpush1.msra.mxu0 0.0
    %2216 = vmatprep.subr.mxu0 0.0
    %2217 = vmatpush1.msra.mxu0 0.0
    %2218 = vmatprep.subr.mxu0 0.0
    %2219 = vmatpush1.msra.mxu0 0.0
    %2220 = vmatprep.subr.mxu0 0.0
    %2221 = vmatpush1.msra.mxu0 0.0
    %2222 = vmatprep.subr.mxu0 0.0
    %2223 = vmatpush1.msra.mxu0 0.0
    %2224 = vmatprep.subr.mxu0 0.0
    %2225 = vmatpush1.msra.mxu0 0.0
    %2226 = vmatprep.subr.mxu0 0.0
    %2227 = vmatpush1.msra.mxu0 0.0
    %2228 = vmatprep.subr.mxu0 0.0
    %2229 = vmatpush1.msra.mxu0 0.0
    %2230 = vmatprep.subr.mxu0 0.0
    %2231 = vmatpush1.msra.mxu0 0.0
    %2232 = vmatprep.subr.mxu0 0.0
    %2233 = vmatpush1.msra.mxu0 0.0
    %2234 = vmatprep.mubr.f32.mxu0 0.0
    %2235 = vmatmul.mubr.f32.gmra.mrb[0].mxu0 %v2168
    %v2236 = vpop.f32.mrb[0].mxu0
    %v2237 = vadd.f32 %v2165, %v2236
    %v2238 = vpop.f32.mrb[0].mxu0
    %2239 = vdwg.mxu0
    %v2240 = vmax.f32 %v2237, 0.0
    %v2241 = vld [vmem:[%s13] sm:$0xff]
    %v2242 = vld [vmem:[%s14] sm:$0x1]
    %v2244 = vlaneseq
    %v2245 = vshrl.u32 %v2244, 7
    %v2246 = vsub.s32 0, %v2245
    %v2247 = vrot.slane %v2242, %v2246
    %v2250 = vsel %vm835, %v2240, 0
    %2252 = vmatprep.subr.mxu0 0.0
    %2253 = vmatpush1.msra.mxu0 %v2241
    %2254 = vmatprep.subr.mxu0 0.0
    %2255 = vmatpush1.msra.mxu0 0.0
    %2256 = vmatprep.subr.mxu0 0.0
    %2257 = vmatpush1.msra.mxu0 0.0
    %2258 = vmatprep.subr.mxu0 0.0
    %2259 = vmatpush1.msra.mxu0 0.0
    %2260 = vmatprep.subr.mxu0 0.0
    %2261 = vmatpush1.msra.mxu0 0.0
    %2262 = vmatprep.subr.mxu0 0.0
    %2263 = vmatpush1.msra.mxu0 0.0
    %2264 = vmatprep.subr.mxu0 0.0
    %2265 = vmatpush1.msra.mxu0 0.0
    %2266 = vmatprep.subr.mxu0 0.0
    %2267 = vmatpush1.msra.mxu0 0.0
    %2268 = vmatprep.subr.mxu0 0.0
    %2269 = vmatpush1.msra.mxu0 0.0
    %2270 = vmatprep.subr.mxu0 0.0
    %2271 = vmatpush1.msra.mxu0 0.0
    %2272 = vmatprep.subr.mxu0 0.0
    %2273 = vmatpush1.msra.mxu0 0.0
    %2274 = vmatprep.subr.mxu0 0.0
    %2275 = vmatpush1.msra.mxu0 0.0
    %2276 = vmatprep.subr.mxu0 0.0
    %2277 = vmatpush1.msra.mxu0 0.0
    %2278 = vmatprep.subr.mxu0 0.0
    %2279 = vmatpush1.msra.mxu0 0.0
    %2280 = vmatprep.subr.mxu0 0.0
    %2281 = vmatpush1.msra.mxu0 0.0
    %2282 = vmatprep.subr.mxu0 0.0
    %2283 = vmatpush1.msra.mxu0 0.0
    %2284 = vmatprep.subr.mxu0 0.0
    %2285 = vmatpush1.msra.mxu0 0.0
    %2286 = vmatprep.subr.mxu0 0.0
    %2287 = vmatpush1.msra.mxu0 0.0
    %2288 = vmatprep.subr.mxu0 0.0
    %2289 = vmatpush1.msra.mxu0 0.0
    %2290 = vmatprep.subr.mxu0 0.0
    %2291 = vmatpush1.msra.mxu0 0.0
    %2292 = vmatprep.subr.mxu0 0.0
    %2293 = vmatpush1.msra.mxu0 0.0
    %2294 = vmatprep.subr.mxu0 0.0
    %2295 = vmatpush1.msra.mxu0 0.0
    %2296 = vmatprep.subr.mxu0 0.0
    %2297 = vmatpush1.msra.mxu0 0.0
    %2298 = vmatprep.subr.mxu0 0.0
    %2299 = vmatpush1.msra.mxu0 0.0
    %2300 = vmatprep.subr.mxu0 0.0
    %2301 = vmatpush1.msra.mxu0 0.0
    %2302 = vmatprep.subr.mxu0 0.0
    %2303 = vmatpush1.msra.mxu0 0.0
    %2304 = vmatprep.subr.mxu0 0.0
    %2305 = vmatpush1.msra.mxu0 0.0
    %2306 = vmatprep.subr.mxu0 0.0
    %2307 = vmatpush1.msra.mxu0 0.0
    %2308 = vmatprep.subr.mxu0 0.0
    %2309 = vmatpush1.msra.mxu0 0.0
    %2310 = vmatprep.subr.mxu0 0.0
    %2311 = vmatpush1.msra.mxu0 0.0
    %2312 = vmatprep.subr.mxu0 0.0
    %2313 = vmatpush1.msra.mxu0 0.0
    %2314 = vmatprep.subr.mxu0 0.0
    %2315 = vmatpush1.msra.mxu0 0.0
    %2316 = vmatprep.mubr.f32.mxu0 0.0
    %2317 = vmatmul.mubr.f32.gmra.mrb[0].mxu0 %v2250
    %v2318 = vpop.f32.mrb[0].mxu0
    %v2319 = vadd.f32 %v2247, %v2318
    %v2320 = vpop.f32.mrb[0].mxu0
    %2321 = vdwg.mxu0
    %vm2322 = vcmask 9216
    %2323 = vst.msk [vmem:[#allocation3] sm:$0x3] %vm2322, %v2319
    // Predicated region
    $region62: #{contrastive_attention_network.1} parent=1 // pred_check
      _
    $region63: #{contrastive_attention_network.1} parent=1 // pred_check_branch
      %2325 = sbr.rel (0) target = $region65
    $region64: #{contrastive_attention_network.1} parent=1 // pred_region
      %s2327 = ssub.s32 32, 32
      %2328 = vsyncadd [#allocation4], %s2327
      %s2330 = sshll.u32 [#allocation3], 4
      %s2331 = int_to_ptr.vmem [resolvable:$true] %s2330
      %2333 = dma.vmem_to_hbm [thread:$0]  %s2331, 32, %s15, [#allocation4]
    $region65: #{contrastive_attention_network.1} parent=1 // pred_fallthru
      _
    // Predicated region
    $region66: #{contrastive_attention_network.1} parent=1 // pred_check
      _
    $region67: #{contrastive_attention_network.1} parent=1 // pred_check_branch
      %2335 = sbr.rel (0) target = $region69
    $region68: #{contrastive_attention_network.1} parent=1 // pred_region
      %2336 = dma.done [#allocation4], 32
    $region69: #{contrastive_attention_network.1} parent=1 // pred_fallthru
      _
    %2337 = vsyncpa [#allocation4], 1

</llo_original>
